<compile_context>
chip_gen: v5e
topology: v5e:2x2
jax: 0.10.0
libtpu: 0.0.40
codegen_flags: <defaults>
</compile_context>

<pallas_src>
import jax
import jax.numpy as jnp
from jax.experimental import pallas as pl
from jax.experimental.pallas import tpu as pltpu

# ---- small, deterministic "KcBERT" config (synthetic weights, no checkpoint) ----
BATCH = 2
SEQ = 8
VOCAB = 128
MAX_POS = 16
TYPE_VOCAB = 2
HIDDEN = 32            # NOTE: lane width 32 < 128 -> masked stores; acceptable at toy size.
HEADS = 4
HEAD_DIM = HIDDEN // HEADS
INTER = 64
LAYERS = 2
EPS = 1e-12            # BERT LayerNorm eps


# ----------------------------- kernel helpers ---------------------------------
def _ln(x, g, b):
    mu = jnp.mean(x, axis=-1, keepdims=True)
    var = jnp.mean((x - mu) ** 2, axis=-1, keepdims=True)
    return (x - mu) * jax.lax.rsqrt(var + EPS) * g + b


def _softmax_lastdim(s):
    m = jnp.max(s, axis=-1, keepdims=True)
    e = jnp.exp(s - m)
    return e * pl.reciprocal(jnp.sum(e, axis=-1, keepdims=True), approx=True)


# ------------------------------- fused kernel ----------------------------------
def kcbert_fused_kernel(
        x_emb_ref, addmask_ref, emb_g_ref, emb_b_ref,
        wqkv_ref, bqkv_ref, wo_ref, bo_ref, g1_ref, be1_ref,
        w1_ref, b1_ref, w2_ref, b2_ref, g2_ref, be2_ref,
        wp_ref, bp_ref,
        out_h_ref, out_p_ref,
        h_scratch):
    l = pl.program_id(0)

    # ---- phase 0: embedding sum LayerNorm -> VMEM-resident hidden state ----
    @pl.when(l == 0)
    def _():
        h_scratch[...] = _ln(x_emb_ref[...], emb_g_ref[...], emb_b_ref[...])

    h = h_scratch[...]                       # [B*S, H]
    addm = addmask_ref[...]                  # [B*S, B*S] additive mask (hoisted)

    wqkv = wqkv_ref[0]                       # [H, 3H]   (this layer's block)
    bqkv = bqkv_ref[0]                       # [1, 3H]
    wo = wo_ref[0]                           # [H, H]
    bo = bo_ref[0]                           # [1, H]

    # Fused QKV projection: one wide MXU push instead of three narrow ones.
    qkv = jnp.dot(h, wqkv, preferred_element_type=jnp.float32) + bqkv      # [B*S, 3H]

    scale = 1.0 / (HEAD_DIM ** 0.5)
    attn = jnp.zeros((BATCH * SEQ, HIDDEN), jnp.float32)
    for n in range(HEADS):                   # static, small unroll (4)
        c0 = n * HEAD_DIM
        qh = qkv[:, c0:c0 + HEAD_DIM]                                       # [B*S, dh]
        kh = qkv[:, HIDDEN + c0:HIDDEN + c0 + HEAD_DIM]
        vh = qkv[:, 2 * HIDDEN + c0:2 * HIDDEN + c0 + HEAD_DIM]
        # One [B*S, B*S] score matmul per head; cross-batch / padded keys are
        # removed by the precomputed block-diagonal additive mask.  Transpose
        # is folded into dot_general (contract on last dims) -> no vxpose.
        s = jax.lax.dot_general(qh, kh, (((1,), (1,)), ((), ())),
                                preferred_element_type=jnp.float32)
        s = s * scale + addm
        p = _softmax_lastdim(s)
        ctx_h = jnp.dot(p, vh, preferred_element_type=jnp.float32)          # [B*S, dh]
        # Fold the head-concat into the output projection: sum_h ctx_h @ Wo[h-rows]
        attn = attn + jnp.dot(ctx_h, wo[c0:c0 + HEAD_DIM, :],
                              preferred_element_type=jnp.float32)
    attn = attn + bo
    h1 = _ln(h + attn, g1_ref[0], be1_ref[0])

    ff = jnp.dot(h1, w1_ref[0], preferred_element_type=jnp.float32) + b1_ref[0]
    # TODO(synk): HF/PyTorch KcBERT uses exact erf GELU; tanh approximation differs ~1e-3.
    ff = jax.nn.gelu(ff, approximate=True)
    ff = jnp.dot(ff, w2_ref[0], preferred_element_type=jnp.float32) + b2_ref[0]
    h_new = _ln(h1 + ff, g2_ref[0], be2_ref[0])
    h_scratch[...] = h_new

    # ---- final phase: emit last_hidden_state and the pooled (CLS) output ----
    @pl.when(l == pl.num_programs(0) - 1)
    def _():
        out_h_ref[...] = h_new
        cls = jnp.concatenate(
            [h_new[b * SEQ:b * SEQ + 1, :] for b in range(BATCH)], axis=0)   # [B, H]
        out_p_ref[...] = jnp.tanh(
            jnp.dot(cls, wp_ref[...], preferred_element_type=jnp.float32) + bp_ref[...])


# ------------------------------- parameters ------------------------------------
def init_params(key):
    def nrm(k, shape):
        return (0.02 * jax.random.normal(k, shape)).astype(jnp.float32)

    keys = jax.random.split(key, 8)
    return {
        "word_emb": nrm(keys[0], (VOCAB, HIDDEN)),
        "pos_emb": nrm(keys[1], (MAX_POS, HIDDEN)),
        "type_emb": nrm(keys[2], (TYPE_VOCAB, HIDDEN)),
        "emb_ln_g": jnp.ones((1, HIDDEN), jnp.float32),
        "emb_ln_b": jnp.zeros((1, HIDDEN), jnp.float32),
        "pool_w": nrm(keys[3], (HIDDEN, HIDDEN)),
        "pool_b": jnp.zeros((1, HIDDEN), jnp.float32),
        # ---- stacked per-layer weights: leading LAYERS axis, selected by index_map ----
        "wqkv": nrm(keys[4], (LAYERS, HIDDEN, 3 * HIDDEN)),
        "bqkv": jnp.zeros((LAYERS, 1, 3 * HIDDEN), jnp.float32),
        "wo":   nrm(keys[5], (LAYERS, HIDDEN, HIDDEN)),
        "bo":   jnp.zeros((LAYERS, 1, HIDDEN), jnp.float32),
        "g1":   jnp.ones((LAYERS, 1, HIDDEN), jnp.float32),
        "be1":  jnp.zeros((LAYERS, 1, HIDDEN), jnp.float32),
        "w1":   nrm(keys[6], (LAYERS, HIDDEN, INTER)),
        "b1":   jnp.zeros((LAYERS, 1, INTER), jnp.float32),
        "w2":   nrm(keys[7], (LAYERS, INTER, HIDDEN)),
        "b2":   jnp.zeros((LAYERS, 1, HIDDEN), jnp.float32),
        "g2":   jnp.ones((LAYERS, 1, HIDDEN), jnp.float32),
        "be2":  jnp.zeros((LAYERS, 1, HIDDEN), jnp.float32),
    }


# ------------------------------- forward ----------------------------------------
def kcbert_mfb_forward(params, input_ids, attention_mask, token_type_ids, labels=None):
    # KcBERTMfbModel.forward just calls the base model and returns its output
    # (labels are accepted but unused, matching the PyTorch module).
    del labels
    B, S = input_ids.shape
    assert B == BATCH and S == SEQ
    H = HIDDEN

    # Embedding gathers are data-dependent table lookups (glue in the wrapper);
    # all math (LN, attention, FFN, pooler) lives in the fused kernel.
    we = params["word_emb"][input_ids]                                    # [B,S,H]
    pe = jnp.broadcast_to(params["pos_emb"][:S][None], (B, S, H))         # [B,S,H]
    te = params["type_emb"][token_type_ids]                               # [B,S,H]
    x_emb = (we + pe + te).reshape(B * S, H).astype(jnp.float32)

    # Precompute the additive attention mask ONCE: block-diagonal over batches
    # + key padding, so a single [B*S, B*S] score matmul per head is valid.
    batch_ids = jnp.repeat(jnp.arange(B), S)
    same_batch = batch_ids[:, None] == batch_ids[None, :]
    key_ok = attention_mask.reshape(B * S).astype(bool)
    addmask = jnp.where(same_batch & key_ok[None, :], 0.0, -1e9).astype(jnp.float32)

    rep = lambda shape: pl.BlockSpec(shape, lambda l: (0, 0))
    per_layer = lambda shape: pl.BlockSpec((1,) + shape, lambda l: (l, 0, 0))

    in_specs = [
        rep((B * S, H)),                                   # x_emb
        rep((B * S, B * S)),                               # addmask
        rep((1, H)), rep((1, H)),                          # emb LN gamma/beta
        per_layer((H, 3 * H)), per_layer((1, 3 * H)),      # wqkv, bqkv
        per_layer((H, H)), per_layer((1, H)),              # wo, bo
        per_layer((1, H)), per_layer((1, H)),              # g1, be1
        per_layer((H, INTER)), per_layer((1, INTER)),      # w1, b1
        per_layer((INTER, H)), per_layer((1, H)),          # w2, b2
        per_layer((1, H)), per_layer((1, H)),              # g2, be2
        rep((H, H)), rep((1, H)),                          # pooler w, b
    ]
    out_specs = (rep((B * S, H)), rep((B, H)))

    last_flat, pooled = pl.pallas_call(
        kcbert_fused_kernel,
        out_shape=(jax.ShapeDtypeStruct((B * S, H), jnp.float32),
                   jax.ShapeDtypeStruct((B, H), jnp.float32)),
        grid_spec=pltpu.PrefetchScalarGridSpec(
            num_scalar_prefetch=0,
            grid=(LAYERS,),
            in_specs=in_specs,
            out_specs=out_specs,
            scratch_shapes=[pltpu.VMEM((B * S, H), jnp.float32)]),
        compiler_params=pltpu.CompilerParams(
            dimension_semantics=("arbitrary",)),   # layer axis is sequential (carried state)
    )(x_emb, addmask,
      params["emb_ln_g"], params["emb_ln_b"],
      params["wqkv"], params["bqkv"], params["wo"], params["bo"],
      params["g1"], params["be1"], params["w1"], params["b1"],
      params["w2"], params["b2"], params["g2"], params["be2"],
      params["pool_w"], params["pool_b"])

    last_hidden = last_flat.reshape(B, S, H)
    # Mimics HF BERT output: (last_hidden_state, pooler_output)
    return last_hidden, pooled


# --------------------------------- main ------------------------------------------
if __name__ == "__main__":
    key = jax.random.PRNGKey(0)
    pkey, ikey, lkey = jax.random.split(key, 3)

    params = init_params(pkey)

    input_ids = jax.random.randint(ikey, (BATCH, SEQ), 0, VOCAB, dtype=jnp.int32)
    attention_mask = jnp.array(
        [[1, 1, 1, 1, 1, 1, 1, 1],
         [1, 1, 1, 1, 1, 1, 0, 0]], dtype=jnp.int32)                      # pad last 2
    token_type_ids = jnp.zeros((BATCH, SEQ), dtype=jnp.int32)
    labels = jax.random.randint(lkey, (BATCH,), 0, 2, dtype=jnp.int32)    # unused

    last_hidden, pooled = kcbert_mfb_forward(
        params, input_ids, attention_mask, token_type_ids, labels)
    jax.block_until_ready((last_hidden, pooled))

    assert last_hidden.shape == (BATCH, SEQ, HIDDEN)
    assert pooled.shape == (BATCH, HIDDEN)
    assert bool(jnp.isfinite(last_hidden).all()) and bool(jnp.isfinite(pooled).all())
    print("KERNEL_OK")
</pallas_src>

<mosaic_0001>
module attributes {stable_mosaic.version = 11 : i64} {
  func.func @kcbert_fused_kernel(%arg0: i32, %arg1: memref<16x32xf32, #tpu.memory_space<vmem>>, %arg2: memref<16x16xf32, #tpu.memory_space<vmem>>, %arg3: memref<1x32xf32, #tpu.memory_space<vmem>>, %arg4: memref<1x32xf32, #tpu.memory_space<vmem>>, %arg5: memref<1x32x96xf32, #tpu.memory_space<vmem>>, %arg6: memref<1x1x96xf32, #tpu.memory_space<vmem>>, %arg7: memref<1x32x32xf32, #tpu.memory_space<vmem>>, %arg8: memref<1x1x32xf32, #tpu.memory_space<vmem>>, %arg9: memref<1x1x32xf32, #tpu.memory_space<vmem>>, %arg10: memref<1x1x32xf32, #tpu.memory_space<vmem>>, %arg11: memref<1x32x64xf32, #tpu.memory_space<vmem>>, %arg12: memref<1x1x64xf32, #tpu.memory_space<vmem>>, %arg13: memref<1x64x32xf32, #tpu.memory_space<vmem>>, %arg14: memref<1x1x32xf32, #tpu.memory_space<vmem>>, %arg15: memref<1x1x32xf32, #tpu.memory_space<vmem>>, %arg16: memref<1x1x32xf32, #tpu.memory_space<vmem>>, %arg17: memref<32x32xf32, #tpu.memory_space<vmem>>, %arg18: memref<1x32xf32, #tpu.memory_space<vmem>>, %arg19: memref<16x32xf32, #tpu.memory_space<vmem>>, %arg20: memref<2x32xf32, #tpu.memory_space<vmem>>, %arg21: memref<16x32xf32, #tpu.memory_space<vmem>>) attributes {dimension_semantics = [#tpu.dimension_semantics<arbitrary>], iteration_bounds = array<i64: 2>, scalar_prefetch = 0 : i64, scratch_operands = 1 : i64, tpu.core_type = #tpu.core_type<tc>, window_params = [{pipeline_mode = #tpu.pipeline_mode<synchronous>, transform_indices = @transform_0, window_bounds = array<i64: 16, 32>}, {pipeline_mode = #tpu.pipeline_mode<synchronous>, transform_indices = @transform_1, window_bounds = array<i64: 16, 16>}, {pipeline_mode = #tpu.pipeline_mode<synchronous>, transform_indices = @transform_2, window_bounds = array<i64: 1, 32>}, {pipeline_mode = #tpu.pipeline_mode<synchronous>, transform_indices = @transform_3, window_bounds = array<i64: 1, 32>}, {transform_indices = @transform_4, window_bounds = array<i64: 1, 32, 96>}, {transform_indices = @transform_5, window_bounds = array<i64: 1, 1, 96>}, {transform_indices = @transform_6, window_bounds = array<i64: 1, 32, 32>}, {transform_indices = @transform_7, window_bounds = array<i64: 1, 1, 32>}, {transform_indices = @transform_8, window_bounds = array<i64: 1, 1, 32>}, {transform_indices = @transform_9, window_bounds = array<i64: 1, 1, 32>}, {transform_indices = @transform_10, window_bounds = array<i64: 1, 32, 64>}, {transform_indices = @transform_11, window_bounds = array<i64: 1, 1, 64>}, {transform_indices = @transform_12, window_bounds = array<i64: 1, 64, 32>}, {transform_indices = @transform_13, window_bounds = array<i64: 1, 1, 32>}, {transform_indices = @transform_14, window_bounds = array<i64: 1, 1, 32>}, {transform_indices = @transform_15, window_bounds = array<i64: 1, 1, 32>}, {pipeline_mode = #tpu.pipeline_mode<synchronous>, transform_indices = @transform_16, window_bounds = array<i64: 32, 32>}, {pipeline_mode = #tpu.pipeline_mode<synchronous>, transform_indices = @transform_17, window_bounds = array<i64: 1, 32>}, {pipeline_mode = #tpu.pipeline_mode<synchronous>, transform_indices = @transform_18, window_bounds = array<i64: 16, 32>}, {pipeline_mode = #tpu.pipeline_mode<synchronous>, transform_indices = @transform_19, window_bounds = array<i64: 2, 32>}]} {
    %c0_i32 = arith.constant 0 : i32
    %0 = arith.cmpi eq, %arg0, %c0_i32 : i32
    %1 = arith.extui %0 : i1 to i32
    %c0_i32_0 = arith.constant 0 : i32
    %2 = arith.cmpi ne, %1, %c0_i32_0 : i32
    scf.if %2 {
      %c0_84 = arith.constant 0 : index
      %c0_85 = arith.constant 0 : index
      %188 = vector.load %arg1[%c0_84, %c0_85] : memref<16x32xf32, #tpu.memory_space<vmem>>, vector<16x32xf32>
      %c0_86 = arith.constant 0 : index
      %c0_87 = arith.constant 0 : index
      %189 = vector.load %arg3[%c0_86, %c0_87] : memref<1x32xf32, #tpu.memory_space<vmem>>, vector<1x32xf32>
      %c0_88 = arith.constant 0 : index
      %c0_89 = arith.constant 0 : index
      %190 = vector.load %arg4[%c0_88, %c0_89] : memref<1x32xf32, #tpu.memory_space<vmem>>, vector<1x32xf32>
      %cst_90 = arith.constant dense<0.000000e+00> : vector<16xf32>
      %191 = vector.multi_reduction <add>, %188, %cst_90 [1] : vector<16x32xf32> to vector<16xf32>
      %192 = vector.shape_cast %191 : vector<16xf32> to vector<16x1xf32>
      %cst_91 = arith.constant 3.200000e+01 : f32
      %193 = vector.broadcast %cst_91 : f32 to vector<16x1xf32>
      %194 = arith.divf %192, %193 : vector<16x1xf32>
      %195 = vector.broadcast %194 : vector<16x1xf32> to vector<16x32xf32>
      %196 = arith.subf %188, %195 : vector<16x32xf32>
      %197 = arith.mulf %196, %196 : vector<16x32xf32>
      %cst_92 = arith.constant dense<0.000000e+00> : vector<16xf32>
      %198 = vector.multi_reduction <add>, %197, %cst_92 [1] : vector<16x32xf32> to vector<16xf32>
      %199 = vector.shape_cast %198 : vector<16xf32> to vector<16x1xf32>
      %cst_93 = arith.constant 3.200000e+01 : f32
      %200 = vector.broadcast %cst_93 : f32 to vector<16x1xf32>
      %201 = arith.divf %199, %200 : vector<16x1xf32>
      %202 = vector.broadcast %194 : vector<16x1xf32> to vector<16x32xf32>
      %203 = arith.subf %188, %202 : vector<16x32xf32>
      %cst_94 = arith.constant 9.99999996E-13 : f32
      %204 = vector.broadcast %cst_94 : f32 to vector<16x1xf32>
      %205 = arith.addf %201, %204 : vector<16x1xf32>
      %206 = math.rsqrt %205 : vector<16x1xf32>
      %207 = vector.broadcast %206 : vector<16x1xf32> to vector<16x32xf32>
      %208 = arith.mulf %203, %207 : vector<16x32xf32>
      %209 = vector.broadcast %189 : vector<1x32xf32> to vector<16x32xf32>
      %210 = arith.mulf %208, %209 : vector<16x32xf32>
      %211 = vector.broadcast %190 : vector<1x32xf32> to vector<16x32xf32>
      %212 = arith.addf %210, %211 : vector<16x32xf32>
      %c0_95 = arith.constant 0 : index
      %c0_96 = arith.constant 0 : index
      %213 = vector.load %arg21[%c0_95, %c0_96] : memref<16x32xf32, #tpu.memory_space<vmem>>, vector<16x32xf32>
      tpu.vector_store %arg21[%c0_95, %c0_96], %212 {strides = array<i32>} : memref<16x32xf32, #tpu.memory_space<vmem>>, vector<16x32xf32>,
    } else {
    }
    %c0 = arith.constant 0 : index
    %c0_1 = arith.constant 0 : index
    %3 = vector.load %arg21[%c0, %c0_1] : memref<16x32xf32, #tpu.memory_space<vmem>>, vector<16x32xf32>
    %c0_2 = arith.constant 0 : index
    %c0_3 = arith.constant 0 : index
    %4 = vector.load %arg2[%c0_2, %c0_3] : memref<16x16xf32, #tpu.memory_space<vmem>>, vector<16x16xf32>
    %c0_4 = arith.constant 0 : index
    %c0_5 = arith.constant 0 : index
    %c0_6 = arith.constant 0 : index
    %5 = vector.load %arg5[%c0_4, %c0_5, %c0_6] : memref<1x32x96xf32, #tpu.memory_space<vmem>>, vector<1x32x96xf32>
    %6 = vector.shape_cast %5 : vector<1x32x96xf32> to vector<32x96xf32>
    %c0_7 = arith.constant 0 : index
    %c0_8 = arith.constant 0 : index
    %c0_9 = arith.constant 0 : index
    %7 = vector.load %arg6[%c0_7, %c0_8, %c0_9] : memref<1x1x96xf32, #tpu.memory_space<vmem>>, vector<1x1x96xf32>
    %8 = vector.shape_cast %7 : vector<1x1x96xf32> to vector<1x96xf32>
    %c0_10 = arith.constant 0 : index
    %c0_11 = arith.constant 0 : index
    %c0_12 = arith.constant 0 : index
    %9 = vector.load %arg7[%c0_10, %c0_11, %c0_12] : memref<1x32x32xf32, #tpu.memory_space<vmem>>, vector<1x32x32xf32>
    %10 = vector.shape_cast %9 : vector<1x32x32xf32> to vector<32x32xf32>
    %c0_13 = arith.constant 0 : index
    %c0_14 = arith.constant 0 : index
    %c0_15 = arith.constant 0 : index
    %11 = vector.load %arg8[%c0_13, %c0_14, %c0_15] : memref<1x1x32xf32, #tpu.memory_space<vmem>>, vector<1x1x32xf32>
    %12 = vector.shape_cast %11 : vector<1x1x32xf32> to vector<1x32xf32>
    %cst = arith.constant dense<0.000000e+00> : vector<16x96xf32>
    %13 = tpu.matmul %3, %6, %cst {dimension_numbers = #tpu.dot_dimension_numbers<[1], [0], [0], [1], [0, 0, 1, 1], [], []>} : vector<16x32xf32>, vector<32x96xf32>, vector<16x96xf32> -> vector<16x96xf32>
    %14 = vector.broadcast %8 : vector<1x96xf32> to vector<16x96xf32>
    %15 = arith.addf %13, %14 : vector<16x96xf32>
    %cst_16 = arith.constant 0.000000e+00 : f32
    %16 = vector.broadcast %cst_16 : f32 to vector<16x32xf32>
    %17 = vector.extract_strided_slice %15 {offsets = [0, 0], sizes = [16, 8], strides = [1, 1]} : vector<16x96xf32> to vector<16x8xf32>
    %18 = vector.extract_strided_slice %15 {offsets = [0, 32], sizes = [16, 8], strides = [1, 1]} : vector<16x96xf32> to vector<16x8xf32>
    %19 = vector.extract_strided_slice %15 {offsets = [0, 64], sizes = [16, 8], strides = [1, 1]} : vector<16x96xf32> to vector<16x8xf32>
    %cst_17 = arith.constant dense<0.000000e+00> : vector<16x16xf32>
    %20 = tpu.matmul %17, %18, %cst_17 {dimension_numbers = #tpu.dot_dimension_numbers<[1], [1], [0], [0], [0, 0, 1, 0], [], []>} : vector<16x8xf32>, vector<16x8xf32>, vector<16x16xf32> -> vector<16x16xf32>
    %cst_18 = arith.constant 0.353553385 : f32
    %21 = vector.broadcast %cst_18 : f32 to vector<16x16xf32>
    %22 = arith.mulf %20, %21 : vector<16x16xf32>
    %23 = arith.addf %22, %4 : vector<16x16xf32>
    %cst_19 = arith.constant dense<0xFF800000> : vector<16xf32>
    %24 = vector.multi_reduction <maximumf>, %23, %cst_19 [1] : vector<16x16xf32> to vector<16xf32>
    %25 = vector.shape_cast %24 : vector<16xf32> to vector<16x1xf32>
    %26 = vector.broadcast %25 : vector<16x1xf32> to vector<16x16xf32>
    %27 = arith.subf %23, %26 : vector<16x16xf32>
    %28 = math.exp %27 : vector<16x16xf32>
    %cst_20 = arith.constant dense<0.000000e+00> : vector<16xf32>
    %29 = vector.multi_reduction <add>, %28, %cst_20 [1] : vector<16x16xf32> to vector<16xf32>
    %30 = vector.shape_cast %29 : vector<16xf32> to vector<16x1xf32>
    %31 = tpu.reciprocal %30 {approx = true} : vector<16x1xf32> -> vector<16x1xf32>
    %32 = vector.broadcast %31 : vector<16x1xf32> to vector<16x16xf32>
    %33 = arith.mulf %28, %32 : vector<16x16xf32>
    %cst_21 = arith.constant dense<0.000000e+00> : vector<16x8xf32>
    %34 = tpu.matmul %33, %19, %cst_21 {dimension_numbers = #tpu.dot_dimension_numbers<[1], [0], [0], [1], [0, 0, 1, 1], [], []>} : vector<16x16xf32>, vector<16x8xf32>, vector<16x8xf32> -> vector<16x8xf32>
    %35 = vector.extract_strided_slice %10 {offsets = [0, 0], sizes = [8, 32], strides = [1, 1]} : vector<32x32xf32> to vector<8x32xf32>
    %cst_22 = arith.constant dense<0.000000e+00> : vector<16x32xf32>
    %36 = tpu.matmul %34, %35, %cst_22 {dimension_numbers = #tpu.dot_dimension_numbers<[1], [0], [0], [1], [0, 0, 1, 1], [], []>} : vector<16x8xf32>, vector<8x32xf32>, vector<16x32xf32> -> vector<16x32xf32>
    %37 = arith.addf %16, %36 : vector<16x32xf32>
    %38 = vector.extract_strided_slice %15 {offsets = [0, 8], sizes = [16, 8], strides = [1, 1]} : vector<16x96xf32> to vector<16x8xf32>
    %39 = vector.extract_strided_slice %15 {offsets = [0, 40], sizes = [16, 8], strides = [1, 1]} : vector<16x96xf32> to vector<16x8xf32>
    %40 = vector.extract_strided_slice %15 {offsets = [0, 72], sizes = [16, 8], strides = [1, 1]} : vector<16x96xf32> to vector<16x8xf32>
    %cst_23 = arith.constant dense<0.000000e+00> : vector<16x16xf32>
    %41 = tpu.matmul %38, %39, %cst_23 {dimension_numbers = #tpu.dot_dimension_numbers<[1], [1], [0], [0], [0, 0, 1, 0], [], []>} : vector<16x8xf32>, vector<16x8xf32>, vector<16x16xf32> -> vector<16x16xf32>
    %cst_24 = arith.constant 0.353553385 : f32
    %42 = vector.broadcast %cst_24 : f32 to vector<16x16xf32>
    %43 = arith.mulf %41, %42 : vector<16x16xf32>
    %44 = arith.addf %43, %4 : vector<16x16xf32>
    %cst_25 = arith.constant dense<0xFF800000> : vector<16xf32>
    %45 = vector.multi_reduction <maximumf>, %44, %cst_25 [1] : vector<16x16xf32> to vector<16xf32>
    %46 = vector.shape_cast %45 : vector<16xf32> to vector<16x1xf32>
    %47 = vector.broadcast %46 : vector<16x1xf32> to vector<16x16xf32>
    %48 = arith.subf %44, %47 : vector<16x16xf32>
    %49 = math.exp %48 : vector<16x16xf32>
    %cst_26 = arith.constant dense<0.000000e+00> : vector<16xf32>
    %50 = vector.multi_reduction <add>, %49, %cst_26 [1] : vector<16x16xf32> to vector<16xf32>
    %51 = vector.shape_cast %50 : vector<16xf32> to vector<16x1xf32>
    %52 = tpu.reciprocal %51 {approx = true} : vector<16x1xf32> -> vector<16x1xf32>
    %53 = vector.broadcast %52 : vector<16x1xf32> to vector<16x16xf32>
    %54 = arith.mulf %49, %53 : vector<16x16xf32>
    %cst_27 = arith.constant dense<0.000000e+00> : vector<16x8xf32>
    %55 = tpu.matmul %54, %40, %cst_27 {dimension_numbers = #tpu.dot_dimension_numbers<[1], [0], [0], [1], [0, 0, 1, 1], [], []>} : vector<16x16xf32>, vector<16x8xf32>, vector<16x8xf32> -> vector<16x8xf32>
    %56 = vector.extract_strided_slice %10 {offsets = [8, 0], sizes = [8, 32], strides = [1, 1]} : vector<32x32xf32> to vector<8x32xf32>
    %cst_28 = arith.constant dense<0.000000e+00> : vector<16x32xf32>
    %57 = tpu.matmul %55, %56, %cst_28 {dimension_numbers = #tpu.dot_dimension_numbers<[1], [0], [0], [1], [0, 0, 1, 1], [], []>} : vector<16x8xf32>, vector<8x32xf32>, vector<16x32xf32> -> vector<16x32xf32>
    %58 = arith.addf %37, %57 : vector<16x32xf32>
    %59 = vector.extract_strided_slice %15 {offsets = [0, 16], sizes = [16, 8], strides = [1, 1]} : vector<16x96xf32> to vector<16x8xf32>
    %60 = vector.extract_strided_slice %15 {offsets = [0, 48], sizes = [16, 8], strides = [1, 1]} : vector<16x96xf32> to vector<16x8xf32>
    %61 = vector.extract_strided_slice %15 {offsets = [0, 80], sizes = [16, 8], strides = [1, 1]} : vector<16x96xf32> to vector<16x8xf32>
    %cst_29 = arith.constant dense<0.000000e+00> : vector<16x16xf32>
    %62 = tpu.matmul %59, %60, %cst_29 {dimension_numbers = #tpu.dot_dimension_numbers<[1], [1], [0], [0], [0, 0, 1, 0], [], []>} : vector<16x8xf32>, vector<16x8xf32>, vector<16x16xf32> -> vector<16x16xf32>
    %cst_30 = arith.constant 0.353553385 : f32
    %63 = vector.broadcast %cst_30 : f32 to vector<16x16xf32>
    %64 = arith.mulf %62, %63 : vector<16x16xf32>
    %65 = arith.addf %64, %4 : vector<16x16xf32>
    %cst_31 = arith.constant dense<0xFF800000> : vector<16xf32>
    %66 = vector.multi_reduction <maximumf>, %65, %cst_31 [1] : vector<16x16xf32> to vector<16xf32>
    %67 = vector.shape_cast %66 : vector<16xf32> to vector<16x1xf32>
    %68 = vector.broadcast %67 : vector<16x1xf32> to vector<16x16xf32>
    %69 = arith.subf %65, %68 : vector<16x16xf32>
    %70 = math.exp %69 : vector<16x16xf32>
    %cst_32 = arith.constant dense<0.000000e+00> : vector<16xf32>
    %71 = vector.multi_reduction <add>, %70, %cst_32 [1] : vector<16x16xf32> to vector<16xf32>
    %72 = vector.shape_cast %71 : vector<16xf32> to vector<16x1xf32>
    %73 = tpu.reciprocal %72 {approx = true} : vector<16x1xf32> -> vector<16x1xf32>
    %74 = vector.broadcast %73 : vector<16x1xf32> to vector<16x16xf32>
    %75 = arith.mulf %70, %74 : vector<16x16xf32>
    %cst_33 = arith.constant dense<0.000000e+00> : vector<16x8xf32>
    %76 = tpu.matmul %75, %61, %cst_33 {dimension_numbers = #tpu.dot_dimension_numbers<[1], [0], [0], [1], [0, 0, 1, 1], [], []>} : vector<16x16xf32>, vector<16x8xf32>, vector<16x8xf32> -> vector<16x8xf32>
    %77 = vector.extract_strided_slice %10 {offsets = [16, 0], sizes = [8, 32], strides = [1, 1]} : vector<32x32xf32> to vector<8x32xf32>
    %cst_34 = arith.constant dense<0.000000e+00> : vector<16x32xf32>
    %78 = tpu.matmul %76, %77, %cst_34 {dimension_numbers = #tpu.dot_dimension_numbers<[1], [0], [0], [1], [0, 0, 1, 1], [], []>} : vector<16x8xf32>, vector<8x32xf32>, vector<16x32xf32> -> vector<16x32xf32>
    %79 = arith.addf %58, %78 : vector<16x32xf32>
    %80 = vector.extract_strided_slice %15 {offsets = [0, 24], sizes = [16, 8], strides = [1, 1]} : vector<16x96xf32> to vector<16x8xf32>
    %81 = vector.extract_strided_slice %15 {offsets = [0, 56], sizes = [16, 8], strides = [1, 1]} : vector<16x96xf32> to vector<16x8xf32>
    %82 = vector.extract_strided_slice %15 {offsets = [0, 88], sizes = [16, 8], strides = [1, 1]} : vector<16x96xf32> to vector<16x8xf32>
    %cst_35 = arith.constant dense<0.000000e+00> : vector<16x16xf32>
    %83 = tpu.matmul %80, %81, %cst_35 {dimension_numbers = #tpu.dot_dimension_numbers<[1], [1], [0], [0], [0, 0, 1, 0], [], []>} : vector<16x8xf32>, vector<16x8xf32>, vector<16x16xf32> -> vector<16x16xf32>
    %cst_36 = arith.constant 0.353553385 : f32
    %84 = vector.broadcast %cst_36 : f32 to vector<16x16xf32>
    %85 = arith.mulf %83, %84 : vector<16x16xf32>
    %86 = arith.addf %85, %4 : vector<16x16xf32>
    %cst_37 = arith.constant dense<0xFF800000> : vector<16xf32>
    %87 = vector.multi_reduction <maximumf>, %86, %cst_37 [1] : vector<16x16xf32> to vector<16xf32>
    %88 = vector.shape_cast %87 : vector<16xf32> to vector<16x1xf32>
    %89 = vector.broadcast %88 : vector<16x1xf32> to vector<16x16xf32>
    %90 = arith.subf %86, %89 : vector<16x16xf32>
    %91 = math.exp %90 : vector<16x16xf32>
    %cst_38 = arith.constant dense<0.000000e+00> : vector<16xf32>
    %92 = vector.multi_reduction <add>, %91, %cst_38 [1] : vector<16x16xf32> to vector<16xf32>
    %93 = vector.shape_cast %92 : vector<16xf32> to vector<16x1xf32>
    %94 = tpu.reciprocal %93 {approx = true} : vector<16x1xf32> -> vector<16x1xf32>
    %95 = vector.broadcast %94 : vector<16x1xf32> to vector<16x16xf32>
    %96 = arith.mulf %91, %95 : vector<16x16xf32>
    %cst_39 = arith.constant dense<0.000000e+00> : vector<16x8xf32>
    %97 = tpu.matmul %96, %82, %cst_39 {dimension_numbers = #tpu.dot_dimension_numbers<[1], [0], [0], [1], [0, 0, 1, 1], [], []>} : vector<16x16xf32>, vector<16x8xf32>, vector<16x8xf32> -> vector<16x8xf32>
    %98 = vector.extract_strided_slice %10 {offsets = [24, 0], sizes = [8, 32], strides = [1, 1]} : vector<32x32xf32> to vector<8x32xf32>
    %cst_40 = arith.constant dense<0.000000e+00> : vector<16x32xf32>
    %99 = tpu.matmul %97, %98, %cst_40 {dimension_numbers = #tpu.dot_dimension_numbers<[1], [0], [0], [1], [0, 0, 1, 1], [], []>} : vector<16x8xf32>, vector<8x32xf32>, vector<16x32xf32> -> vector<16x32xf32>
    %100 = arith.addf %79, %99 : vector<16x32xf32>
    %101 = vector.broadcast %12 : vector<1x32xf32> to vector<16x32xf32>
    %102 = arith.addf %100, %101 : vector<16x32xf32>
    %103 = arith.addf %3, %102 : vector<16x32xf32>
    %c0_41 = arith.constant 0 : index
    %c0_42 = arith.constant 0 : index
    %c0_43 = arith.constant 0 : index
    %104 = vector.load %arg9[%c0_41, %c0_42, %c0_43] : memref<1x1x32xf32, #tpu.memory_space<vmem>>, vector<1x1x32xf32>
    %105 = vector.shape_cast %104 : vector<1x1x32xf32> to vector<1x32xf32>
    %c0_44 = arith.constant 0 : index
    %c0_45 = arith.constant 0 : index
    %c0_46 = arith.constant 0 : index
    %106 = vector.load %arg10[%c0_44, %c0_45, %c0_46] : memref<1x1x32xf32, #tpu.memory_space<vmem>>, vector<1x1x32xf32>
    %107 = vector.shape_cast %106 : vector<1x1x32xf32> to vector<1x32xf32>
    %cst_47 = arith.constant dense<0.000000e+00> : vector<16xf32>
    %108 = vector.multi_reduction <add>, %103, %cst_47 [1] : vector<16x32xf32> to vector<16xf32>
    %109 = vector.shape_cast %108 : vector<16xf32> to vector<16x1xf32>
    %cst_48 = arith.constant 3.200000e+01 : f32
    %110 = vector.broadcast %cst_48 : f32 to vector<16x1xf32>
    %111 = arith.divf %109, %110 : vector<16x1xf32>
    %112 = vector.broadcast %111 : vector<16x1xf32> to vector<16x32xf32>
    %113 = arith.subf %103, %112 : vector<16x32xf32>
    %114 = arith.mulf %113, %113 : vector<16x32xf32>
    %cst_49 = arith.constant dense<0.000000e+00> : vector<16xf32>
    %115 = vector.multi_reduction <add>, %114, %cst_49 [1] : vector<16x32xf32> to vector<16xf32>
    %116 = vector.shape_cast %115 : vector<16xf32> to vector<16x1xf32>
    %cst_50 = arith.constant 3.200000e+01 : f32
    %117 = vector.broadcast %cst_50 : f32 to vector<16x1xf32>
    %118 = arith.divf %116, %117 : vector<16x1xf32>
    %119 = vector.broadcast %111 : vector<16x1xf32> to vector<16x32xf32>
    %120 = arith.subf %103, %119 : vector<16x32xf32>
    %cst_51 = arith.constant 9.99999996E-13 : f32
    %121 = vector.broadcast %cst_51 : f32 to vector<16x1xf32>
    %122 = arith.addf %118, %121 : vector<16x1xf32>
    %123 = math.rsqrt %122 : vector<16x1xf32>
    %124 = vector.broadcast %123 : vector<16x1xf32> to vector<16x32xf32>
    %125 = arith.mulf %120, %124 : vector<16x32xf32>
    %126 = vector.broadcast %105 : vector<1x32xf32> to vector<16x32xf32>
    %127 = arith.mulf %125, %126 : vector<16x32xf32>
    %128 = vector.broadcast %107 : vector<1x32xf32> to vector<16x32xf32>
    %129 = arith.addf %127, %128 : vector<16x32xf32>
    %c0_52 = arith.constant 0 : index
    %c0_53 = arith.constant 0 : index
    %c0_54 = arith.constant 0 : index
    %130 = vector.load %arg11[%c0_52, %c0_53, %c0_54] : memref<1x32x64xf32, #tpu.memory_space<vmem>>, vector<1x32x64xf32>
    %131 = vector.shape_cast %130 : vector<1x32x64xf32> to vector<32x64xf32>
    %cst_55 = arith.constant dense<0.000000e+00> : vector<16x64xf32>
    %132 = tpu.matmul %129, %131, %cst_55 {dimension_numbers = #tpu.dot_dimension_numbers<[1], [0], [0], [1], [0, 0, 1, 1], [], []>} : vector<16x32xf32>, vector<32x64xf32>, vector<16x64xf32> -> vector<16x64xf32>
    %c0_56 = arith.constant 0 : index
    %c0_57 = arith.constant 0 : index
    %c0_58 = arith.constant 0 : index
    %133 = vector.load %arg12[%c0_56, %c0_57, %c0_58] : memref<1x1x64xf32, #tpu.memory_space<vmem>>, vector<1x1x64xf32>
    %134 = vector.shape_cast %133 : vector<1x1x64xf32> to vector<1x64xf32>
    %135 = vector.broadcast %134 : vector<1x64xf32> to vector<16x64xf32>
    %136 = arith.addf %132, %135 : vector<16x64xf32>
    %137 = arith.mulf %136, %136 : vector<16x64xf32>
    %138 = arith.mulf %136, %137 : vector<16x64xf32>
    %cst_59 = arith.constant 4.471500e-02 : f32
    %139 = vector.broadcast %cst_59 : f32 to vector<16x64xf32>
    %140 = arith.mulf %139, %138 : vector<16x64xf32>
    %141 = arith.addf %136, %140 : vector<16x64xf32>
    %cst_60 = arith.constant 0.797884583 : f32
    %142 = vector.broadcast %cst_60 : f32 to vector<16x64xf32>
    %143 = arith.mulf %142, %141 : vector<16x64xf32>
    %144 = math.tanh %143 : vector<16x64xf32>
    %cst_61 = arith.constant 1.000000e+00 : f32
    %145 = vector.broadcast %cst_61 : f32 to vector<16x64xf32>
    %146 = arith.addf %145, %144 : vector<16x64xf32>
    %cst_62 = arith.constant 5.000000e-01 : f32
    %147 = vector.broadcast %cst_62 : f32 to vector<16x64xf32>
    %148 = arith.mulf %147, %146 : vector<16x64xf32>
    %149 = arith.mulf %136, %148 : vector<16x64xf32>
    %c0_63 = arith.constant 0 : index
    %c0_64 = arith.constant 0 : index
    %c0_65 = arith.constant 0 : index
    %150 = vector.load %arg13[%c0_63, %c0_64, %c0_65] : memref<1x64x32xf32, #tpu.memory_space<vmem>>, vector<1x64x32xf32>
    %151 = vector.shape_cast %150 : vector<1x64x32xf32> to vector<64x32xf32>
    %cst_66 = arith.constant dense<0.000000e+00> : vector<16x32xf32>
    %152 = tpu.matmul %149, %151, %cst_66 {dimension_numbers = #tpu.dot_dimension_numbers<[1], [0], [0], [1], [0, 0, 1, 1], [], []>} : vector<16x64xf32>, vector<64x32xf32>, vector<16x32xf32> -> vector<16x32xf32>
    %c0_67 = arith.constant 0 : index
    %c0_68 = arith.constant 0 : index
    %c0_69 = arith.constant 0 : index
    %153 = vector.load %arg14[%c0_67, %c0_68, %c0_69] : memref<1x1x32xf32, #tpu.memory_space<vmem>>, vector<1x1x32xf32>
    %154 = vector.shape_cast %153 : vector<1x1x32xf32> to vector<1x32xf32>
    %155 = vector.broadcast %154 : vector<1x32xf32> to vector<16x32xf32>
    %156 = arith.addf %152, %155 : vector<16x32xf32>
    %157 = arith.addf %129, %156 : vector<16x32xf32>
    %c0_70 = arith.constant 0 : index
    %c0_71 = arith.constant 0 : index
    %c0_72 = arith.constant 0 : index
    %158 = vector.load %arg15[%c0_70, %c0_71, %c0_72] : memref<1x1x32xf32, #tpu.memory_space<vmem>>, vector<1x1x32xf32>
    %159 = vector.shape_cast %158 : vector<1x1x32xf32> to vector<1x32xf32>
    %c0_73 = arith.constant 0 : index
    %c0_74 = arith.constant 0 : index
    %c0_75 = arith.constant 0 : index
    %160 = vector.load %arg16[%c0_73, %c0_74, %c0_75] : memref<1x1x32xf32, #tpu.memory_space<vmem>>, vector<1x1x32xf32>
    %161 = vector.shape_cast %160 : vector<1x1x32xf32> to vector<1x32xf32>
    %cst_76 = arith.constant dense<0.000000e+00> : vector<16xf32>
    %162 = vector.multi_reduction <add>, %157, %cst_76 [1] : vector<16x32xf32> to vector<16xf32>
    %163 = vector.shape_cast %162 : vector<16xf32> to vector<16x1xf32>
    %cst_77 = arith.constant 3.200000e+01 : f32
    %164 = vector.broadcast %cst_77 : f32 to vector<16x1xf32>
    %165 = arith.divf %163, %164 : vector<16x1xf32>
    %166 = vector.broadcast %165 : vector<16x1xf32> to vector<16x32xf32>
    %167 = arith.subf %157, %166 : vector<16x32xf32>
    %168 = arith.mulf %167, %167 : vector<16x32xf32>
    %cst_78 = arith.constant dense<0.000000e+00> : vector<16xf32>
    %169 = vector.multi_reduction <add>, %168, %cst_78 [1] : vector<16x32xf32> to vector<16xf32>
    %170 = vector.shape_cast %169 : vector<16xf32> to vector<16x1xf32>
    %cst_79 = arith.constant 3.200000e+01 : f32
    %171 = vector.broadcast %cst_79 : f32 to vector<16x1xf32>
    %172 = arith.divf %170, %171 : vector<16x1xf32>
    %173 = vector.broadcast %165 : vector<16x1xf32> to vector<16x32xf32>
    %174 = arith.subf %157, %173 : vector<16x32xf32>
    %cst_80 = arith.constant 9.99999996E-13 : f32
    %175 = vector.broadcast %cst_80 : f32 to vector<16x1xf32>
    %176 = arith.addf %172, %175 : vector<16x1xf32>
    %177 = math.rsqrt %176 : vector<16x1xf32>
    %178 = vector.broadcast %177 : vector<16x1xf32> to vector<16x32xf32>
    %179 = arith.mulf %174, %178 : vector<16x32xf32>
    %180 = vector.broadcast %159 : vector<1x32xf32> to vector<16x32xf32>
    %181 = arith.mulf %179, %180 : vector<16x32xf32>
    %182 = vector.broadcast %161 : vector<1x32xf32> to vector<16x32xf32>
    %183 = arith.addf %181, %182 : vector<16x32xf32>
    %c0_81 = arith.constant 0 : index
    %c0_82 = arith.constant 0 : index
    %184 = vector.load %arg21[%c0_81, %c0_82] : memref<16x32xf32, #tpu.memory_space<vmem>>, vector<16x32xf32>
    tpu.vector_store %arg21[%c0_81, %c0_82], %183 {strides = array<i32>} : memref<16x32xf32, #tpu.memory_space<vmem>>, vector<16x32xf32>,
    %c1_i32 = arith.constant 1 : i32
    %185 = arith.cmpi eq, %arg0, %c1_i32 : i32
    %186 = arith.extui %185 : i1 to i32
    %c0_i32_83 = arith.constant 0 : i32
    %187 = arith.cmpi ne, %186, %c0_i32_83 : i32
    scf.if %187 {
      %c0_84 = arith.constant 0 : index
      %c0_85 = arith.constant 0 : index
      %188 = vector.load %arg19[%c0_84, %c0_85] : memref<16x32xf32, #tpu.memory_space<vmem>>, vector<16x32xf32>
      tpu.vector_store %arg19[%c0_84, %c0_85], %183 {strides = array<i32>} : memref<16x32xf32, #tpu.memory_space<vmem>>, vector<16x32xf32>,
      %189 = vector.extract_strided_slice %183 {offsets = [0, 0], sizes = [1, 32], strides = [1, 1]} : vector<16x32xf32> to vector<1x32xf32>
      %190 = vector.extract_strided_slice %183 {offsets = [8, 0], sizes = [1, 32], strides = [1, 1]} : vector<16x32xf32> to vector<1x32xf32>
      %191 = tpu.concatenate %189, %190 in 0 : vector<1x32xf32>, vector<1x32xf32> -> vector<2x32xf32>
      %c0_86 = arith.constant 0 : index
      %c0_87 = arith.constant 0 : index
      %192 = vector.load %arg17[%c0_86, %c0_87] : memref<32x32xf32, #tpu.memory_space<vmem>>, vector<32x32xf32>
      %cst_88 = arith.constant dense<0.000000e+00> : vector<2x32xf32>
      %193 = tpu.matmul %191, %192, %cst_88 {dimension_numbers = #tpu.dot_dimension_numbers<[1], [0], [0], [1], [0, 0, 1, 1], [], []>} : vector<2x32xf32>, vector<32x32xf32>, vector<2x32xf32> -> vector<2x32xf32>
      %c0_89 = arith.constant 0 : index
      %c0_90 = arith.constant 0 : index
      %194 = vector.load %arg18[%c0_89, %c0_90] : memref<1x32xf32, #tpu.memory_space<vmem>>, vector<1x32xf32>
      %195 = vector.broadcast %194 : vector<1x32xf32> to vector<2x32xf32>
      %196 = arith.addf %193, %195 : vector<2x32xf32>
      %197 = math.tanh %196 : vector<2x32xf32>
      %c0_91 = arith.constant 0 : index
      %c0_92 = arith.constant 0 : index
      %198 = vector.load %arg20[%c0_91, %c0_92] : memref<2x32xf32, #tpu.memory_space<vmem>>, vector<2x32xf32>
      tpu.vector_store %arg20[%c0_91, %c0_92], %197 {strides = array<i32>} : memref<2x32xf32, #tpu.memory_space<vmem>>, vector<2x32xf32>,
    } else {
    }
    return
  }
  func.func @transform_0(%arg0: i32) -> (i32, i32) {
    %c0_i32 = arith.constant 0 : i32
    %c0_i32_0 = arith.constant 0 : i32
    %c0_i32_1 = arith.constant 0 : i32
    return %c0_i32, %c0_i32_0 : i32, i32
  }
  func.func @transform_1(%arg0: i32) -> (i32, i32) {
    %c0_i32 = arith.constant 0 : i32
    %c0_i32_0 = arith.constant 0 : i32
    %c0_i32_1 = arith.constant 0 : i32
    return %c0_i32, %c0_i32_0 : i32, i32
  }
  func.func @transform_2(%arg0: i32) -> (i32, i32) {
    %c0_i32 = arith.constant 0 : i32
    %c0_i32_0 = arith.constant 0 : i32
    %c0_i32_1 = arith.constant 0 : i32
    return %c0_i32, %c0_i32_0 : i32, i32
  }
  func.func @transform_3(%arg0: i32) -> (i32, i32) {
    %c0_i32 = arith.constant 0 : i32
    %c0_i32_0 = arith.constant 0 : i32
    %c0_i32_1 = arith.constant 0 : i32
    return %c0_i32, %c0_i32_0 : i32, i32
  }
  func.func @transform_4(%arg0: i32) -> (i32, i32, i32) {
    %c0_i32 = arith.constant 0 : i32
    %c0_i32_0 = arith.constant 0 : i32
    %c0_i32_1 = arith.constant 0 : i32
    return %arg0, %c0_i32, %c0_i32_0 : i32, i32, i32
  }
  func.func @transform_5(%arg0: i32) -> (i32, i32, i32) {
    %c0_i32 = arith.constant 0 : i32
    %c0_i32_0 = arith.constant 0 : i32
    %c0_i32_1 = arith.constant 0 : i32
    return %arg0, %c0_i32, %c0_i32_0 : i32, i32, i32
  }
  func.func @transform_6(%arg0: i32) -> (i32, i32, i32) {
    %c0_i32 = arith.constant 0 : i32
    %c0_i32_0 = arith.constant 0 : i32
    %c0_i32_1 = arith.constant 0 : i32
    return %arg0, %c0_i32, %c0_i32_0 : i32, i32, i32
  }
  func.func @transform_7(%arg0: i32) -> (i32, i32, i32) {
    %c0_i32 = arith.constant 0 : i32
    %c0_i32_0 = arith.constant 0 : i32
    %c0_i32_1 = arith.constant 0 : i32
    return %arg0, %c0_i32, %c0_i32_0 : i32, i32, i32
  }
  func.func @transform_8(%arg0: i32) -> (i32, i32, i32) {
    %c0_i32 = arith.constant 0 : i32
    %c0_i32_0 = arith.constant 0 : i32
    %c0_i32_1 = arith.constant 0 : i32
    return %arg0, %c0_i32, %c0_i32_0 : i32, i32, i32
  }
  func.func @transform_9(%arg0: i32) -> (i32, i32, i32) {
    %c0_i32 = arith.constant 0 : i32
    %c0_i32_0 = arith.constant 0 : i32
    %c0_i32_1 = arith.constant 0 : i32
    return %arg0, %c0_i32, %c0_i32_0 : i32, i32, i32
  }
  func.func @transform_10(%arg0: i32) -> (i32, i32, i32) {
    %c0_i32 = arith.constant 0 : i32
    %c0_i32_0 = arith.constant 0 : i32
    %c0_i32_1 = arith.constant 0 : i32
    return %arg0, %c0_i32, %c0_i32_0 : i32, i32, i32
  }
  func.func @transform_11(%arg0: i32) -> (i32, i32, i32) {
    %c0_i32 = arith.constant 0 : i32
    %c0_i32_0 = arith.constant 0 : i32
    %c0_i32_1 = arith.constant 0 : i32
    return %arg0, %c0_i32, %c0_i32_0 : i32, i32, i32
  }
  func.func @transform_12(%arg0: i32) -> (i32, i32, i32) {
    %c0_i32 = arith.constant 0 : i32
    %c0_i32_0 = arith.constant 0 : i32
    %c0_i32_1 = arith.constant 0 : i32
    return %arg0, %c0_i32, %c0_i32_0 : i32, i32, i32
  }
  func.func @transform_13(%arg0: i32) -> (i32, i32, i32) {
    %c0_i32 = arith.constant 0 : i32
    %c0_i32_0 = arith.constant 0 : i32
    %c0_i32_1 = arith.constant 0 : i32
    return %arg0, %c0_i32, %c0_i32_0 : i32, i32, i32
  }
  func.func @transform_14(%arg0: i32) -> (i32, i32, i32) {
    %c0_i32 = arith.constant 0 : i32
    %c0_i32_0 = arith.constant 0 : i32
    %c0_i32_1 = arith.constant 0 : i32
    return %arg0, %c0_i32, %c0_i32_0 : i32, i32, i32
  }
  func.func @transform_15(%arg0: i32) -> (i32, i32, i32) {
    %c0_i32 = arith.constant 0 : i32
    %c0_i32_0 = arith.constant 0 : i32
    %c0_i32_1 = arith.constant 0 : i32
    return %arg0, %c0_i32, %c0_i32_0 : i32, i32, i32
  }
  func.func @transform_16(%arg0: i32) -> (i32, i32) {
    %c0_i32 = arith.constant 0 : i32
    %c0_i32_0 = arith.constant 0 : i32
    %c0_i32_1 = arith.constant 0 : i32
    return %c0_i32, %c0_i32_0 : i32, i32
  }
  func.func @transform_17(%arg0: i32) -> (i32, i32) {
    %c0_i32 = arith.constant 0 : i32
    %c0_i32_0 = arith.constant 0 : i32
    %c0_i32_1 = arith.constant 0 : i32
    return %c0_i32, %c0_i32_0 : i32, i32
  }
  func.func @transform_18(%arg0: i32) -> (i32, i32) {
    %c0_i32 = arith.constant 0 : i32
    %c0_i32_0 = arith.constant 0 : i32
    %c0_i32_1 = arith.constant 0 : i32
    return %c0_i32, %c0_i32_0 : i32, i32
  }
  func.func @transform_19(%arg0: i32) -> (i32, i32) {
    %c0_i32 = arith.constant 0 : i32
    %c0_i32_0 = arith.constant 0 : i32
    %c0_i32_1 = arith.constant 0 : i32
    return %c0_i32, %c0_i32_0 : i32, i32
  }
}

</mosaic_0001>

<llo_original>
// kernel: tpu_custom_call.1
$region0: #{tpu_custom_call.1}
  #allocation0 [shape = 'u32[]', space=smem, size = 0x4, offset = 0x4, fixed_abs, tag = 'smem constant byte address 0x4 - core index']
  #allocation1 [shape = 'u32[72,128]{1,0:T(1,128)}', space=vmem, size = 0x9000, scoped, tag = 'internal scratch']
  #allocation2 [shape = 'f32[16,32]{1,0:T(8,128)}', space=vmem, size = 0x2000, scoped, tag = 'scratch operand']
  %s0 = inlined_call_operand.hbm [shape: f32[16,32], index: 0, kind: input, shape index: {}]
  %s1 = inlined_call_operand.hbm [shape: f32[16,16], index: 1, kind: input, shape index: {}]
  %s2 = inlined_call_operand.hbm [shape: f32[1,32], index: 2, kind: input, shape index: {}]
  %s3 = inlined_call_operand.hbm [shape: f32[1,32], index: 3, kind: input, shape index: {}]
  %s4 = inlined_call_operand.vmem [shape: f32[2,32,96], index: 4, kind: input, shape index: {}]
  %s5 = inlined_call_operand.vmem [shape: f32[2,1,96], index: 5, kind: input, shape index: {}]
  %s6 = inlined_call_operand.vmem [shape: f32[2,32,32], index: 6, kind: input, shape index: {}]
  %s7 = inlined_call_operand.vmem [shape: f32[2,1,32], index: 7, kind: input, shape index: {}]
  %s8 = inlined_call_operand.hbm [shape: f32[2,1,32], index: 8, kind: input, shape index: {}]
  %s9 = inlined_call_operand.vmem [shape: f32[2,1,32], index: 9, kind: input, shape index: {}]
  %s10 = inlined_call_operand.vmem [shape: f32[2,32,64], index: 10, kind: input, shape index: {}]
  %s11 = inlined_call_operand.vmem [shape: f32[2,1,64], index: 11, kind: input, shape index: {}]
  %s12 = inlined_call_operand.vmem [shape: f32[2,64,32], index: 12, kind: input, shape index: {}]
  %s13 = inlined_call_operand.vmem [shape: f32[2,1,32], index: 13, kind: input, shape index: {}]
  %s14 = inlined_call_operand.hbm [shape: f32[2,1,32], index: 14, kind: input, shape index: {}]
  %s15 = inlined_call_operand.vmem [shape: f32[2,1,32], index: 15, kind: input, shape index: {}]
  %s16 = inlined_call_operand.hbm [shape: f32[32,32], index: 16, kind: input, shape index: {}]
  %s17 = inlined_call_operand.vmem [shape: f32[1,32], index: 17, kind: input, shape index: {}]
  %s18 = inlined_call_operand.hbm [shape: f32[16,32], index: 18, kind: output, shape index: {0}]
  %s19 = inlined_call_operand.hbm [shape: f32[2,32], index: 19, kind: output, shape index: {1}]
  %20 = xla_tuple %s18, %s19
  %s21 = sld [smem:[#allocation0]]
  $region149: #{tpu_custom_call.1} parent=0
    _
  %s23 = ssub.s32 1, %s21
  %s24 = scalar_select 0, %s23, %s21
  $region1: #{tpu_custom_call.1} parent=0
    #allocation3 [shape = 'u8[8192]{0}', space=vmem, size = 0x2000, scoped, tag = 'input window, operand 0, single buffered']
    #allocation4 [shape = 's32[2]{0}', space=sflag, size = 0x8, scoped, tag = 'scoped memory for tpu_custom_call.1']
    #allocation5 [shape = 's32[2]{0}', space=sflag, size = 0x8, scoped, tag = 'scoped memory for tpu_custom_call.1']
    #allocation6 [shape = 'u8[8192]{0}', space=vmem, size = 0x2000, scoped, tag = 'input window, operand 1, single buffered']
    #allocation7 [shape = 's32[1]{0}', space=sflag, size = 0x4, scoped, tag = 'scoped memory for tpu_custom_call.1']
    #allocation8 [shape = 'u8[512]{0}', space=vmem, size = 0x400, scoped, tag = 'input window, operand 2, single buffered']
    #allocation9 [shape = 'u8[512]{0}', space=vmem, size = 0x400, scoped, tag = 'input window, operand 3, single buffered']
    #allocation10 [shape = 's32[1]{0}', space=sflag, size = 0x4, scoped, tag = 'scoped memory for tpu_custom_call.1']
    #allocation11 [shape = 'u8[1024]{0}', space=vmem, size = 0x400, scoped, tag = 'input window, operand 8']
    #allocation12 [shape = 'u8[1024]{0}', space=vmem, size = 0x400, scoped, tag = 'input window, operand 14']
    #allocation13 [shape = 'u8[16384]{0}', space=vmem, size = 0x4000, scoped, tag = 'input window, operand 16, single buffered']
    #allocation14 [shape = 'u8[8192]{0}', space=vmem, size = 0x2000, scoped, tag = 'output window, operand 0, single buffered']
    #allocation15 [shape = 'u8[1024]{0}', space=vmem, size = 0x400, scoped, tag = 'output window, operand 1, single buffered']
    #allocation16 [shape = 's32[1]{0}', space=sflag, size = 0x4, scoped, tag = 'scoped memory for tpu_custom_call.1']
    %25 = vsyncpa [#allocation4], 0
    %26 = vsyncpa [#allocation7], 0
    %27 = vsyncpa [#allocation10], 0
    %28 = vsyncpa [#allocation5], 0
    %29 = vsyncpa [#allocation16], 0
    loop: start=0, step=1, limit=4
    $region2: #{tpu_custom_call.1} parent=1 // loop_pre_header
      _
    $region3: #{tpu_custom_call.1} parent=1 // loop_header
      %s31 = sphi 0, %s35
      %p32 = scmp.ge.s32.totalorder %s31, 4
      %s39 = sphi 0, %s39
      %s41 = sphi 0, %s39
      %s42 = sphi 0, %s41
      %s56 = sphi 0, %s42
      %s60 = sphi 0, %s60
      %s62 = sphi 0, %s60
      %s63 = sphi 0, %s62
      %s77 = sphi 0, %s63
      %s81 = sphi 0, %s81
      %s83 = sphi 0, %s81
      %s84 = sphi 0, %s83
      %s98 = sphi 0, %s84
      %s102 = sphi 0, %s102
      %s104 = sphi 0, %s102
      %s105 = sphi 0, %s104
      %s119 = sphi 0, %s105
      %s125 = sphi 0, %s127
      %s128 = sphi 0, %s125
      %s129 = sphi 0, %s128
      %s145 = sphi 0, %s129
      %s151 = sphi 0, %s153
      %s154 = sphi 0, %s151
      %s155 = sphi 0, %s154
      %s171 = sphi 0, %s155
      %s177 = sphi 0, %s179
      %s180 = sphi 0, %s177
      %s181 = sphi 0, %s180
      %s197 = sphi 0, %s181
      %s203 = sphi 0, %s205
      %s206 = sphi 0, %s203
      %s207 = sphi 0, %s206
      %s223 = sphi 0, %s207
      %s229 = sphi 0, %s231
      %s232 = sphi 0, %s229
      %s233 = sphi 0, %s232
      %s249 = sphi 0, %s233
      %s255 = sphi 0, %s257
      %s258 = sphi 0, %s255
      %s259 = sphi 0, %s258
      %s275 = sphi 0, %s259
      %s281 = sphi 0, %s283
      %s284 = sphi 0, %s281
      %s285 = sphi 0, %s284
      %s301 = sphi 0, %s285
      %s307 = sphi 0, %s309
      %s310 = sphi 0, %s307
      %s311 = sphi 0, %s310
      %s327 = sphi 0, %s311
      %s333 = sphi 0, %s335
      %s336 = sphi 0, %s333
      %s337 = sphi 0, %s336
      %s353 = sphi 0, %s337
      %s359 = sphi 0, %s361
      %s362 = sphi 0, %s359
      %s363 = sphi 0, %s362
      %s379 = sphi 0, %s363
      %s385 = sphi 0, %s387
      %s388 = sphi 0, %s385
      %s389 = sphi 0, %s388
      %s405 = sphi 0, %s389
      %s411 = sphi 0, %s413
      %s414 = sphi 0, %s411
      %s415 = sphi 0, %s414
      %s431 = sphi 0, %s415
      %s435 = sphi 0, %s435
      %s437 = sphi 0, %s435
      %s438 = sphi 0, %s437
      %s452 = sphi 0, %s438
      %s456 = sphi 0, %s456
      %s458 = sphi 0, %s456
      %s459 = sphi 0, %s458
      %s473 = sphi 0, %s459
      %s477 = sphi 0, %s477
      %s479 = sphi 0, %s477
      %s480 = sphi 0, %s479
      %s494 = sphi 0, %s480
      %s498 = sphi 0, %s498
      %s500 = sphi 0, %s498
      %s501 = sphi 0, %s500
      %s515 = sphi 0, %s501
    $region4: #{tpu_custom_call.1} parent=1 // loop_header_branch
      %34 = sbr.rel (%p32) target = $region8
    $region5: #{tpu_custom_call.1} parent=1 // loop_body
      %s36 = ssub.s32 %s31, 1
      %s37 = ssub.s32 %s31, 2
      %s38 = sadd.s32 %s31, 1
      %s40 = sadd.s32 %s39, 1
      %p43 = scmp.eq.s32.totalorder %s31, 1
      %p44 = scmp.ne.s32.totalorder %s39, %s41
      %p45 = scmp.eq.s32.totalorder %s31, 0
      %p46 = por %p44, %p45
      %p47 = scmp.ne.s32.totalorder %s39, %s41
      %p48 = scmp.eq.s32.totalorder %s36, 1
      %p49 = por %p47, %p48
      %p50 = scmp.ne.s32.totalorder %s41, %s42
      %p51 = scmp.eq.s32.totalorder %s36, 0
      %p52 = por %p50, %p51
      %p53 = scmp.ne.s32.totalorder %s41, %s42
      %p54 = scmp.eq.s32.totalorder %s37, 1
      %p55 = por %p53, %p54
      %p57 = scmp.ne.s32.totalorder %s42, %s56
      %p58 = scmp.eq.s32.totalorder %s37, 0
      %p59 = por %p57, %p58
      %s61 = sadd.s32 %s60, 1
      %p64 = scmp.eq.s32.totalorder %s31, 1
      %p65 = scmp.ne.s32.totalorder %s60, %s62
      %p66 = scmp.eq.s32.totalorder %s31, 0
      %p67 = por %p65, %p66
      %p68 = scmp.ne.s32.totalorder %s60, %s62
      %p69 = scmp.eq.s32.totalorder %s36, 1
      %p70 = por %p68, %p69
      %p71 = scmp.ne.s32.totalorder %s62, %s63
      %p72 = scmp.eq.s32.totalorder %s36, 0
      %p73 = por %p71, %p72
      %p74 = scmp.ne.s32.totalorder %s62, %s63
      %p75 = scmp.eq.s32.totalorder %s37, 1
      %p76 = por %p74, %p75
      %p78 = scmp.ne.s32.totalorder %s63, %s77
      %p79 = scmp.eq.s32.totalorder %s37, 0
      %p80 = por %p78, %p79
      %s82 = sadd.s32 %s81, 1
      %p85 = scmp.eq.s32.totalorder %s31, 1
      %p86 = scmp.ne.s32.totalorder %s81, %s83
      %p87 = scmp.eq.s32.totalorder %s31, 0
      %p88 = por %p86, %p87
      %p89 = scmp.ne.s32.totalorder %s81, %s83
      %p90 = scmp.eq.s32.totalorder %s36, 1
      %p91 = por %p89, %p90
      %p92 = scmp.ne.s32.totalorder %s83, %s84
      %p93 = scmp.eq.s32.totalorder %s36, 0
      %p94 = por %p92, %p93
      %p95 = scmp.ne.s32.totalorder %s83, %s84
      %p96 = scmp.eq.s32.totalorder %s37, 1
      %p97 = por %p95, %p96
      %p99 = scmp.ne.s32.totalorder %s84, %s98
      %p100 = scmp.eq.s32.totalorder %s37, 0
      %p101 = por %p99, %p100
      %s103 = sadd.s32 %s102, 1
      %p106 = scmp.eq.s32.totalorder %s31, 1
      %p107 = scmp.ne.s32.totalorder %s102, %s104
      %p108 = scmp.eq.s32.totalorder %s31, 0
      %p109 = por %p107, %p108
      %p110 = scmp.ne.s32.totalorder %s102, %s104
      %p111 = scmp.eq.s32.totalorder %s36, 1
      %p112 = por %p110, %p111
      %p113 = scmp.ne.s32.totalorder %s104, %s105
      %p114 = scmp.eq.s32.totalorder %s36, 0
      %p115 = por %p113, %p114
      %p116 = scmp.ne.s32.totalorder %s104, %s105
      %p117 = scmp.eq.s32.totalorder %s37, 1
      %p118 = por %p116, %p117
      %p120 = scmp.ne.s32.totalorder %s105, %s119
      %p121 = scmp.eq.s32.totalorder %s37, 0
      %p122 = por %p120, %p121
      %s123 = ssub.s32 %s31, %s38
      %p124 = scmp.eq.s32.totalorder %s123, 0
      %s126 = sadd.s32 %s125, 1
      %s127 = scalar_select %p124, %s125, %s126
      %p130 = pneg %p124
      %p131 = scmp.eq.s32.totalorder %s31, 1
      %p132 = por %p130, %p131
      %p133 = scmp.ne.s32.totalorder %s125, %s128
      %p134 = scmp.eq.s32.totalorder %s31, 0
      %p135 = por %p133, %p134
      %p136 = scmp.ne.s32.totalorder %s125, %s128
      %p137 = scmp.eq.s32.totalorder %s36, 1
      %p138 = por %p136, %p137
      %p139 = scmp.ne.s32.totalorder %s128, %s129
      %p140 = scmp.eq.s32.totalorder %s36, 0
      %p141 = por %p139, %p140
      %p142 = scmp.ne.s32.totalorder %s128, %s129
      %p143 = scmp.eq.s32.totalorder %s37, 1
      %p144 = por %p142, %p143
      %p146 = scmp.ne.s32.totalorder %s129, %s145
      %p147 = scmp.eq.s32.totalorder %s37, 0
      %p148 = por %p146, %p147
      %s149 = ssub.s32 %s31, %s38
      %p150 = scmp.eq.s32.totalorder %s149, 0
      %s152 = sadd.s32 %s151, 1
      %s153 = scalar_select %p150, %s151, %s152
      %p156 = pneg %p150
      %p157 = scmp.eq.s32.totalorder %s31, 1
      %p158 = por %p156, %p157
      %p159 = scmp.ne.s32.totalorder %s151, %s154
      %p160 = scmp.eq.s32.totalorder %s31, 0
      %p161 = por %p159, %p160
      %p162 = scmp.ne.s32.totalorder %s151, %s154
      %p163 = scmp.eq.s32.totalorder %s36, 1
      %p164 = por %p162, %p163
      %p165 = scmp.ne.s32.totalorder %s154, %s155
      %p166 = scmp.eq.s32.totalorder %s36, 0
      %p167 = por %p165, %p166
      %p168 = scmp.ne.s32.totalorder %s154, %s155
      %p169 = scmp.eq.s32.totalorder %s37, 1
      %p170 = por %p168, %p169
      %p172 = scmp.ne.s32.totalorder %s155, %s171
      %p173 = scmp.eq.s32.totalorder %s37, 0
      %p174 = por %p172, %p173
      %s175 = ssub.s32 %s31, %s38
      %p176 = scmp.eq.s32.totalorder %s175, 0
      %s178 = sadd.s32 %s177, 1
      %s179 = scalar_select %p176, %s177, %s178
      %p182 = pneg %p176
      %p183 = scmp.eq.s32.totalorder %s31, 1
      %p184 = por %p182, %p183
      %p185 = scmp.ne.s32.totalorder %s177, %s180
      %p186 = scmp.eq.s32.totalorder %s31, 0
      %p187 = por %p185, %p186
      %p188 = scmp.ne.s32.totalorder %s177, %s180
      %p189 = scmp.eq.s32.totalorder %s36, 1
      %p190 = por %p188, %p189
      %p191 = scmp.ne.s32.totalorder %s180, %s181
      %p192 = scmp.eq.s32.totalorder %s36, 0
      %p193 = por %p191, %p192
      %p194 = scmp.ne.s32.totalorder %s180, %s181
      %p195 = scmp.eq.s32.totalorder %s37, 1
      %p196 = por %p194, %p195
      %p198 = scmp.ne.s32.totalorder %s181, %s197
      %p199 = scmp.eq.s32.totalorder %s37, 0
      %p200 = por %p198, %p199
      %s201 = ssub.s32 %s31, %s38
      %p202 = scmp.eq.s32.totalorder %s201, 0
      %s204 = sadd.s32 %s203, 1
      %s205 = scalar_select %p202, %s203, %s204
      %p208 = pneg %p202
      %p209 = scmp.eq.s32.totalorder %s31, 1
      %p210 = por %p208, %p209
      %p211 = scmp.ne.s32.totalorder %s203, %s206
      %p212 = scmp.eq.s32.totalorder %s31, 0
      %p213 = por %p211, %p212
      %p214 = scmp.ne.s32.totalorder %s203, %s206
      %p215 = scmp.eq.s32.totalorder %s36, 1
      %p216 = por %p214, %p215
      %p217 = scmp.ne.s32.totalorder %s206, %s207
      %p218 = scmp.eq.s32.totalorder %s36, 0
      %p219 = por %p217, %p218
      %p220 = scmp.ne.s32.totalorder %s206, %s207
      %p221 = scmp.eq.s32.totalorder %s37, 1
      %p222 = por %p220, %p221
      %p224 = scmp.ne.s32.totalorder %s207, %s223
      %p225 = scmp.eq.s32.totalorder %s37, 0
      %p226 = por %p224, %p225
      %s227 = ssub.s32 %s31, %s38
      %p228 = scmp.eq.s32.totalorder %s227, 0
      %s230 = sadd.s32 %s229, 1
      %s231 = scalar_select %p228, %s229, %s230
      %p234 = pneg %p228
      %p235 = scmp.eq.s32.totalorder %s31, 1
      %p236 = por %p234, %p235
      %p237 = scmp.ne.s32.totalorder %s229, %s232
      %p238 = scmp.eq.s32.totalorder %s31, 0
      %p239 = por %p237, %p238
      %p240 = scmp.ne.s32.totalorder %s229, %s232
      %p241 = scmp.eq.s32.totalorder %s36, 1
      %p242 = por %p240, %p241
      %p243 = scmp.ne.s32.totalorder %s232, %s233
      %p244 = scmp.eq.s32.totalorder %s36, 0
      %p245 = por %p243, %p244
      %p246 = scmp.ne.s32.totalorder %s232, %s233
      %p247 = scmp.eq.s32.totalorder %s37, 1
      %p248 = por %p246, %p247
      %p250 = scmp.ne.s32.totalorder %s233, %s249
      %p251 = scmp.eq.s32.totalorder %s37, 0
      %p252 = por %p250, %p251
      %s253 = ssub.s32 %s31, %s38
      %p254 = scmp.eq.s32.totalorder %s253, 0
      %s256 = sadd.s32 %s255, 1
      %s257 = scalar_select %p254, %s255, %s256
      %p260 = pneg %p254
      %p261 = scmp.eq.s32.totalorder %s31, 1
      %p262 = por %p260, %p261
      %p263 = scmp.ne.s32.totalorder %s255, %s258
      %p264 = scmp.eq.s32.totalorder %s31, 0
      %p265 = por %p263, %p264
      %p266 = scmp.ne.s32.totalorder %s255, %s258
      %p267 = scmp.eq.s32.totalorder %s36, 1
      %p268 = por %p266, %p267
      %p269 = scmp.ne.s32.totalorder %s258, %s259
      %p270 = scmp.eq.s32.totalorder %s36, 0
      %p271 = por %p269, %p270
      %p272 = scmp.ne.s32.totalorder %s258, %s259
      %p273 = scmp.eq.s32.totalorder %s37, 1
      %p274 = por %p272, %p273
      %p276 = scmp.ne.s32.totalorder %s259, %s275
      %p277 = scmp.eq.s32.totalorder %s37, 0
      %p278 = por %p276, %p277
      %s279 = ssub.s32 %s31, %s38
      %p280 = scmp.eq.s32.totalorder %s279, 0
      %s282 = sadd.s32 %s281, 1
      %s283 = scalar_select %p280, %s281, %s282
      %p286 = pneg %p280
      %p287 = scmp.eq.s32.totalorder %s31, 1
      %p288 = por %p286, %p287
      %p289 = scmp.ne.s32.totalorder %s281, %s284
      %p290 = scmp.eq.s32.totalorder %s31, 0
      %p291 = por %p289, %p290
      %p292 = scmp.ne.s32.totalorder %s281, %s284
      %p293 = scmp.eq.s32.totalorder %s36, 1
      %p294 = por %p292, %p293
      %p295 = scmp.ne.s32.totalorder %s284, %s285
      %p296 = scmp.eq.s32.totalorder %s36, 0
      %p297 = por %p295, %p296
      %p298 = scmp.ne.s32.totalorder %s284, %s285
      %p299 = scmp.eq.s32.totalorder %s37, 1
      %p300 = por %p298, %p299
      %p302 = scmp.ne.s32.totalorder %s285, %s301
      %p303 = scmp.eq.s32.totalorder %s37, 0
      %p304 = por %p302, %p303
      %s305 = ssub.s32 %s31, %s38
      %p306 = scmp.eq.s32.totalorder %s305, 0
      %s308 = sadd.s32 %s307, 1
      %s309 = scalar_select %p306, %s307, %s308
      %p312 = pneg %p306
      %p313 = scmp.eq.s32.totalorder %s31, 1
      %p314 = por %p312, %p313
      %p315 = scmp.ne.s32.totalorder %s307, %s310
      %p316 = scmp.eq.s32.totalorder %s31, 0
      %p317 = por %p315, %p316
      %p318 = scmp.ne.s32.totalorder %s307, %s310
      %p319 = scmp.eq.s32.totalorder %s36, 1
      %p320 = por %p318, %p319
      %p321 = scmp.ne.s32.totalorder %s310, %s311
      %p322 = scmp.eq.s32.totalorder %s36, 0
      %p323 = por %p321, %p322
      %p324 = scmp.ne.s32.totalorder %s310, %s311
      %p325 = scmp.eq.s32.totalorder %s37, 1
      %p326 = por %p324, %p325
      %p328 = scmp.ne.s32.totalorder %s311, %s327
      %p329 = scmp.eq.s32.totalorder %s37, 0
      %p330 = por %p328, %p329
      %s331 = ssub.s32 %s31, %s38
      %p332 = scmp.eq.s32.totalorder %s331, 0
      %s334 = sadd.s32 %s333, 1
      %s335 = scalar_select %p332, %s333, %s334
      %p338 = pneg %p332
      %p339 = scmp.eq.s32.totalorder %s31, 1
      %p340 = por %p338, %p339
      %p341 = scmp.ne.s32.totalorder %s333, %s336
      %p342 = scmp.eq.s32.totalorder %s31, 0
      %p343 = por %p341, %p342
      %p344 = scmp.ne.s32.totalorder %s333, %s336
      %p345 = scmp.eq.s32.totalorder %s36, 1
      %p346 = por %p344, %p345
      %p347 = scmp.ne.s32.totalorder %s336, %s337
      %p348 = scmp.eq.s32.totalorder %s36, 0
      %p349 = por %p347, %p348
      %p350 = scmp.ne.s32.totalorder %s336, %s337
      %p351 = scmp.eq.s32.totalorder %s37, 1
      %p352 = por %p350, %p351
      %p354 = scmp.ne.s32.totalorder %s337, %s353
      %p355 = scmp.eq.s32.totalorder %s37, 0
      %p356 = por %p354, %p355
      %s357 = ssub.s32 %s31, %s38
      %p358 = scmp.eq.s32.totalorder %s357, 0
      %s360 = sadd.s32 %s359, 1
      %s361 = scalar_select %p358, %s359, %s360
      %p364 = pneg %p358
      %p365 = scmp.eq.s32.totalorder %s31, 1
      %p366 = por %p364, %p365
      %p367 = scmp.ne.s32.totalorder %s359, %s362
      %p368 = scmp.eq.s32.totalorder %s31, 0
      %p369 = por %p367, %p368
      %p370 = scmp.ne.s32.totalorder %s359, %s362
      %p371 = scmp.eq.s32.totalorder %s36, 1
      %p372 = por %p370, %p371
      %p373 = scmp.ne.s32.totalorder %s362, %s363
      %p374 = scmp.eq.s32.totalorder %s36, 0
      %p375 = por %p373, %p374
      %p376 = scmp.ne.s32.totalorder %s362, %s363
      %p377 = scmp.eq.s32.totalorder %s37, 1
      %p378 = por %p376, %p377
      %p380 = scmp.ne.s32.totalorder %s363, %s379
      %p381 = scmp.eq.s32.totalorder %s37, 0
      %p382 = por %p380, %p381
      %s383 = ssub.s32 %s31, %s38
      %p384 = scmp.eq.s32.totalorder %s383, 0
      %s386 = sadd.s32 %s385, 1
      %s387 = scalar_select %p384, %s385, %s386
      %p390 = pneg %p384
      %p391 = scmp.eq.s32.totalorder %s31, 1
      %p392 = por %p390, %p391
      %p393 = scmp.ne.s32.totalorder %s385, %s388
      %p394 = scmp.eq.s32.totalorder %s31, 0
      %p395 = por %p393, %p394
      %p396 = scmp.ne.s32.totalorder %s385, %s388
      %p397 = scmp.eq.s32.totalorder %s36, 1
      %p398 = por %p396, %p397
      %p399 = scmp.ne.s32.totalorder %s388, %s389
      %p400 = scmp.eq.s32.totalorder %s36, 0
      %p401 = por %p399, %p400
      %p402 = scmp.ne.s32.totalorder %s388, %s389
      %p403 = scmp.eq.s32.totalorder %s37, 1
      %p404 = por %p402, %p403
      %p406 = scmp.ne.s32.totalorder %s389, %s405
      %p407 = scmp.eq.s32.totalorder %s37, 0
      %p408 = por %p406, %p407
      %s409 = ssub.s32 %s31, %s38
      %p410 = scmp.eq.s32.totalorder %s409, 0
      %s412 = sadd.s32 %s411, 1
      %s413 = scalar_select %p410, %s411, %s412
      %p416 = pneg %p410
      %p417 = scmp.eq.s32.totalorder %s31, 1
      %p418 = por %p416, %p417
      %p419 = scmp.ne.s32.totalorder %s411, %s414
      %p420 = scmp.eq.s32.totalorder %s31, 0
      %p421 = por %p419, %p420
      %p422 = scmp.ne.s32.totalorder %s411, %s414
      %p423 = scmp.eq.s32.totalorder %s36, 1
      %p424 = por %p422, %p423
      %p425 = scmp.ne.s32.totalorder %s414, %s415
      %p426 = scmp.eq.s32.totalorder %s36, 0
      %p427 = por %p425, %p426
      %p428 = scmp.ne.s32.totalorder %s414, %s415
      %p429 = scmp.eq.s32.totalorder %s37, 1
      %p430 = por %p428, %p429
      %p432 = scmp.ne.s32.totalorder %s415, %s431
      %p433 = scmp.eq.s32.totalorder %s37, 0
      %p434 = por %p432, %p433
      %s436 = sadd.s32 %s435, 1
      %p439 = scmp.eq.s32.totalorder %s31, 1
      %p440 = scmp.ne.s32.totalorder %s435, %s437
      %p441 = scmp.eq.s32.totalorder %s31, 0
      %p442 = por %p440, %p441
      %p443 = scmp.ne.s32.totalorder %s435, %s437
      %p444 = scmp.eq.s32.totalorder %s36, 1
      %p445 = por %p443, %p444
      %p446 = scmp.ne.s32.totalorder %s437, %s438
      %p447 = scmp.eq.s32.totalorder %s36, 0
      %p448 = por %p446, %p447
      %p449 = scmp.ne.s32.totalorder %s437, %s438
      %p450 = scmp.eq.s32.totalorder %s37, 1
      %p451 = por %p449, %p450
      %p453 = scmp.ne.s32.totalorder %s438, %s452
      %p454 = scmp.eq.s32.totalorder %s37, 0
      %p455 = por %p453, %p454
      %s457 = sadd.s32 %s456, 1
      %p460 = scmp.eq.s32.totalorder %s31, 1
      %p461 = scmp.ne.s32.totalorder %s456, %s458
      %p462 = scmp.eq.s32.totalorder %s31, 0
      %p463 = por %p461, %p462
      %p464 = scmp.ne.s32.totalorder %s456, %s458
      %p465 = scmp.eq.s32.totalorder %s36, 1
      %p466 = por %p464, %p465
      %p467 = scmp.ne.s32.totalorder %s458, %s459
      %p468 = scmp.eq.s32.totalorder %s36, 0
      %p469 = por %p467, %p468
      %p470 = scmp.ne.s32.totalorder %s458, %s459
      %p471 = scmp.eq.s32.totalorder %s37, 1
      %p472 = por %p470, %p471
      %p474 = scmp.ne.s32.totalorder %s459, %s473
      %p475 = scmp.eq.s32.totalorder %s37, 0
      %p476 = por %p474, %p475
      %s478 = sadd.s32 %s477, 1
      %p481 = scmp.eq.s32.totalorder %s31, 1
      %p482 = scmp.ne.s32.totalorder %s477, %s479
      %p483 = scmp.eq.s32.totalorder %s31, 0
      %p484 = por %p482, %p483
      %p485 = scmp.ne.s32.totalorder %s477, %s479
      %p486 = scmp.eq.s32.totalorder %s36, 1
      %p487 = por %p485, %p486
      %p488 = scmp.ne.s32.totalorder %s479, %s480
      %p489 = scmp.eq.s32.totalorder %s36, 0
      %p490 = por %p488, %p489
      %p491 = scmp.ne.s32.totalorder %s479, %s480
      %p492 = scmp.eq.s32.totalorder %s37, 1
      %p493 = por %p491, %p492
      %p495 = scmp.ne.s32.totalorder %s480, %s494
      %p496 = scmp.eq.s32.totalorder %s37, 0
      %p497 = por %p495, %p496
      %s499 = sadd.s32 %s498, 1
      %p502 = scmp.eq.s32.totalorder %s31, 1
      %p503 = scmp.ne.s32.totalorder %s498, %s500
      %p504 = scmp.eq.s32.totalorder %s31, 0
      %p505 = por %p503, %p504
      %p506 = scmp.ne.s32.totalorder %s498, %s500
      %p507 = scmp.eq.s32.totalorder %s36, 1
      %p508 = por %p506, %p507
      %p509 = scmp.ne.s32.totalorder %s500, %s501
      %p510 = scmp.eq.s32.totalorder %s36, 0
      %p511 = por %p509, %p510
      %p512 = scmp.ne.s32.totalorder %s500, %s501
      %p513 = scmp.eq.s32.totalorder %s37, 1
      %p514 = por %p512, %p513
      %p516 = scmp.ne.s32.totalorder %s501, %s515
      %p517 = scmp.eq.s32.totalorder %s37, 0
      %p518 = por %p516, %p517
      %p519 = scmp.le.s32.totalorder 1, %s31
      %p520 = scmp.lt.s32.totalorder %s31, 3
      %p521 = pnand %p519, %p520
      %p522 = pneg %p521
      // Predicated region
      $region9: #{tpu_custom_call.1} parent=5 // pred_check
        _
      $region10: #{tpu_custom_call.1} parent=5 // pred_check_branch
        %524 = sbr.rel (%p521) target = $region12
      $region11: #{tpu_custom_call.1} parent=5 // pred_region
        %s525 = ssub.s32 %s31, 1
        // Predicated region
        $region13: #{tpu_custom_call.1} parent=11 // pred_check
          %p526 = pneg %p52
        $region14: #{tpu_custom_call.1} parent=11 // pred_check_branch
          %528 = sbr.rel (%p526) target = $region16
        $region15: #{tpu_custom_call.1} parent=11 // pred_region
          %530 = vsyncadd [#allocation4], 0
          %s531 = sshll.u32 %s0, 4
          %s532 = int_to_ptr.hbm [resolvable:$true] %s531
          %s533 = sshll.u32 [#allocation3], 4
          %s534 = int_to_ptr.vmem [resolvable:$true] %s533
          %539 = dma.hbm_to_vmem [thread:$0]  %s532, 256, %s534, [#allocation4], 128, 128, 8
        $region16: #{tpu_custom_call.1} parent=11 // pred_fallthru
          _
        // Predicated region
        $region17: #{tpu_custom_call.1} parent=11 // pred_check
          %p540 = pneg %p73
        $region18: #{tpu_custom_call.1} parent=11 // pred_check_branch
          %542 = sbr.rel (%p540) target = $region20
        $region19: #{tpu_custom_call.1} parent=11 // pred_region
          %544 = vsyncadd [#allocation7], 0
          %s545 = sshll.u32 %s1, 4
          %s546 = int_to_ptr.hbm [resolvable:$true] %s545
          %s547 = sshll.u32 [#allocation6], 4
          %s548 = int_to_ptr.vmem [resolvable:$true] %s547
          %553 = dma.hbm_to_vmem [thread:$0]  %s546, 256, %s548, [#allocation7], 128, 128, 8
        $region20: #{tpu_custom_call.1} parent=11 // pred_fallthru
          _
        // Predicated region
        $region21: #{tpu_custom_call.1} parent=11 // pred_check
          %p554 = pneg %p94
        $region22: #{tpu_custom_call.1} parent=11 // pred_check_branch
          %556 = sbr.rel (%p554) target = $region24
        $region23: #{tpu_custom_call.1} parent=11 // pred_region
          %558 = vsyncadd [#allocation7], 0
          %s560 = sshll.u32 %s2, 4
          %s561 = int_to_ptr.hbm [resolvable:$true] %s560
          %s562 = sshll.u32 [#allocation8], 4
          %s563 = int_to_ptr.vmem [resolvable:$true] %s562
          %565 = dma.hbm_to_vmem [thread:$0]  %s561, 16, %s563, [#allocation7]
        $region24: #{tpu_custom_call.1} parent=11 // pred_fallthru
          _
        // Predicated region
        $region25: #{tpu_custom_call.1} parent=11 // pred_check
          %p566 = pneg %p115
        $region26: #{tpu_custom_call.1} parent=11 // pred_check_branch
          %568 = sbr.rel (%p566) target = $region28
        $region27: #{tpu_custom_call.1} parent=11 // pred_region
          %570 = vsyncadd [#allocation10], 0
          %s572 = sshll.u32 %s3, 4
          %s573 = int_to_ptr.hbm [resolvable:$true] %s572
          %s574 = sshll.u32 [#allocation9], 4
          %s575 = int_to_ptr.vmem [resolvable:$true] %s574
          %577 = dma.hbm_to_vmem [thread:$0]  %s573, 16, %s575, [#allocation10]
        $region28: #{tpu_custom_call.1} parent=11 // pred_fallthru
          _
        // Predicated region
        $region29: #{tpu_custom_call.1} parent=11 // pred_check
          %p578 = pneg %p448
        $region30: #{tpu_custom_call.1} parent=11 // pred_check_branch
          %580 = sbr.rel (%p578) target = $region32
        $region31: #{tpu_custom_call.1} parent=11 // pred_region
          %582 = vsyncadd [#allocation7], 0
          %s583 = sshll.u32 %s16, 4
          %s584 = int_to_ptr.hbm [resolvable:$true] %s583
          %s585 = sshll.u32 [#allocation13], 4
          %s586 = int_to_ptr.vmem [resolvable:$true] %s585
          %591 = dma.hbm_to_vmem [thread:$0]  %s584, 512, %s586, [#allocation7], 128, 128, 8
        $region32: #{tpu_custom_call.1} parent=11 // pred_fallthru
          _
        // Predicated region
        $region33: #{tpu_custom_call.1} parent=11 // pred_check
          %p592 = pneg %p469
        $region34: #{tpu_custom_call.1} parent=11 // pred_check_branch
          %594 = sbr.rel (%p592) target = $region36
        $region35: #{tpu_custom_call.1} parent=11 // pred_region
          _
        $region36: #{tpu_custom_call.1} parent=11 // pred_fallthru
          _
      $region12: #{tpu_custom_call.1} parent=5 // pred_fallthru
        _
      %p595 = scmp.lt.s32.totalorder %s31, 2
      // Predicated region
      $region37: #{tpu_custom_call.1} parent=5 // pred_check
        %p596 = pneg %p595
      $region38: #{tpu_custom_call.1} parent=5 // pred_check_branch
        %598 = sbr.rel (%p596) target = $region40
      $region39: #{tpu_custom_call.1} parent=5 // pred_region
        // Predicated region
        $region41: #{tpu_custom_call.1} parent=39 // pred_check
          %p599 = pneg %p135
        $region42: #{tpu_custom_call.1} parent=39 // pred_check_branch
          %601 = sbr.rel (%p599) target = $region44
        $region43: #{tpu_custom_call.1} parent=39 // pred_region
          %p602 = scmp.lt.s32.totalorder %s31, 1
          %s603 = scalar_select %p602, %s31, 1
          %s604 = smul.addr %s603, 4
          %s605 = smul.addr %s604, 8
          %s606 = scalar_lea.vmem %s4, %s605
        $region44: #{tpu_custom_call.1} parent=39 // pred_fallthru
          _
        // Predicated region
        $region45: #{tpu_custom_call.1} parent=39 // pred_check
          %p607 = pneg %p161
        $region46: #{tpu_custom_call.1} parent=39 // pred_check_branch
          %609 = sbr.rel (%p607) target = $region48
        $region47: #{tpu_custom_call.1} parent=39 // pred_region
          %p610 = scmp.lt.s32.totalorder %s31, 1
          %s611 = scalar_select %p610, %s31, 1
          %s612 = scalar_lea.vmem %s5, %s611
        $region48: #{tpu_custom_call.1} parent=39 // pred_fallthru
          _
        // Predicated region
        $region49: #{tpu_custom_call.1} parent=39 // pred_check
          %p613 = pneg %p187
        $region50: #{tpu_custom_call.1} parent=39 // pred_check_branch
          %615 = sbr.rel (%p613) target = $region52
        $region51: #{tpu_custom_call.1} parent=39 // pred_region
          %p616 = scmp.lt.s32.totalorder %s31, 1
          %s617 = scalar_select %p616, %s31, 1
          %s618 = smul.addr %s617, 4
          %s619 = smul.addr %s618, 8
          %s620 = scalar_lea.vmem %s6, %s619
        $region52: #{tpu_custom_call.1} parent=39 // pred_fallthru
          _
        // Predicated region
        $region53: #{tpu_custom_call.1} parent=39 // pred_check
          %p621 = pneg %p213
        $region54: #{tpu_custom_call.1} parent=39 // pred_check_branch
          %623 = sbr.rel (%p621) target = $region56
        $region55: #{tpu_custom_call.1} parent=39 // pred_region
          %p624 = scmp.lt.s32.totalorder %s31, 1
          %s625 = scalar_select %p624, %s31, 1
          %s626 = scalar_lea.vmem %s7, %s625
        $region56: #{tpu_custom_call.1} parent=39 // pred_fallthru
          _
        // Predicated region
        $region57: #{tpu_custom_call.1} parent=39 // pred_check
          %p627 = pneg %p239
        $region58: #{tpu_custom_call.1} parent=39 // pred_check_branch
          %629 = sbr.rel (%p627) target = $region60
        $region59: #{tpu_custom_call.1} parent=39 // pred_region
          %s630 = sand.u32 %s31, 1
          %s631 = scalar_lea.sflag [#allocation4], %s630
          %s632 = sand.u32 %s229, 1
          %s633 = scalar_lea.vmem [#allocation11], %s632
          %635 = vsyncadd %s631, 0
          %s636 = scalar_lea.hbm %s8, %s31
          %s638 = sshll.u32 %s636, 4
          %s639 = int_to_ptr.hbm [resolvable:$true] %s638
          %s640 = sshll.u32 %s633, 4
          %s641 = int_to_ptr.vmem [resolvable:$true] %s640
          %643 = dma.hbm_to_vmem [thread:$0]  %s639, 16, %s641, %s631
        $region60: #{tpu_custom_call.1} parent=39 // pred_fallthru
          _
        // Predicated region
        $region61: #{tpu_custom_call.1} parent=39 // pred_check
          %p644 = pneg %p265
        $region62: #{tpu_custom_call.1} parent=39 // pred_check_branch
          %646 = sbr.rel (%p644) target = $region64
        $region63: #{tpu_custom_call.1} parent=39 // pred_region
          %p647 = scmp.lt.s32.totalorder %s31, 1
          %s648 = scalar_select %p647, %s31, 1
          %s649 = scalar_lea.vmem %s9, %s648
        $region64: #{tpu_custom_call.1} parent=39 // pred_fallthru
          _
        // Predicated region
        $region65: #{tpu_custom_call.1} parent=39 // pred_check
          %p650 = pneg %p291
        $region66: #{tpu_custom_call.1} parent=39 // pred_check_branch
          %652 = sbr.rel (%p650) target = $region68
        $region67: #{tpu_custom_call.1} parent=39 // pred_region
          %p653 = scmp.lt.s32.totalorder %s31, 1
          %s654 = scalar_select %p653, %s31, 1
          %s655 = smul.addr %s654, 4
          %s656 = smul.addr %s655, 8
          %s657 = scalar_lea.vmem %s10, %s656
        $region68: #{tpu_custom_call.1} parent=39 // pred_fallthru
          _
        // Predicated region
        $region69: #{tpu_custom_call.1} parent=39 // pred_check
          %p658 = pneg %p317
        $region70: #{tpu_custom_call.1} parent=39 // pred_check_branch
          %660 = sbr.rel (%p658) target = $region72
        $region71: #{tpu_custom_call.1} parent=39 // pred_region
          %p661 = scmp.lt.s32.totalorder %s31, 1
          %s662 = scalar_select %p661, %s31, 1
          %s663 = scalar_lea.vmem %s11, %s662
        $region72: #{tpu_custom_call.1} parent=39 // pred_fallthru
          _
        // Predicated region
        $region73: #{tpu_custom_call.1} parent=39 // pred_check
          %p664 = pneg %p343
        $region74: #{tpu_custom_call.1} parent=39 // pred_check_branch
          %666 = sbr.rel (%p664) target = $region76
        $region75: #{tpu_custom_call.1} parent=39 // pred_region
          %p667 = scmp.lt.s32.totalorder %s31, 1
          %s668 = scalar_select %p667, %s31, 1
          %s669 = smul.addr %s668, 8
          %s670 = smul.addr %s669, 8
          %s671 = scalar_lea.vmem %s12, %s670
        $region76: #{tpu_custom_call.1} parent=39 // pred_fallthru
          _
        // Predicated region
        $region77: #{tpu_custom_call.1} parent=39 // pred_check
          %p672 = pneg %p369
        $region78: #{tpu_custom_call.1} parent=39 // pred_check_branch
          %674 = sbr.rel (%p672) target = $region80
        $region79: #{tpu_custom_call.1} parent=39 // pred_region
          %p675 = scmp.lt.s32.totalorder %s31, 1
          %s676 = scalar_select %p675, %s31, 1
          %s677 = scalar_lea.vmem %s13, %s676
        $region80: #{tpu_custom_call.1} parent=39 // pred_fallthru
          _
        // Predicated region
        $region81: #{tpu_custom_call.1} parent=39 // pred_check
          %p678 = pneg %p395
        $region82: #{tpu_custom_call.1} parent=39 // pred_check_branch
          %680 = sbr.rel (%p678) target = $region84
        $region83: #{tpu_custom_call.1} parent=39 // pred_region
          %s681 = sand.u32 %s31, 1
          %s682 = scalar_lea.sflag [#allocation4], %s681
          %s683 = sand.u32 %s385, 1
          %s684 = scalar_lea.vmem [#allocation12], %s683
          %686 = vsyncadd %s682, 0
          %s687 = scalar_lea.hbm %s14, %s31
          %s689 = sshll.u32 %s687, 4
          %s690 = int_to_ptr.hbm [resolvable:$true] %s689
          %s691 = sshll.u32 %s684, 4
          %s692 = int_to_ptr.vmem [resolvable:$true] %s691
          %694 = dma.hbm_to_vmem [thread:$0]  %s690, 16, %s692, %s682
        $region84: #{tpu_custom_call.1} parent=39 // pred_fallthru
          _
        // Predicated region
        $region85: #{tpu_custom_call.1} parent=39 // pred_check
          %p695 = pneg %p421
        $region86: #{tpu_custom_call.1} parent=39 // pred_check_branch
          %697 = sbr.rel (%p695) target = $region88
        $region87: #{tpu_custom_call.1} parent=39 // pred_region
          %p698 = scmp.lt.s32.totalorder %s31, 1
          %s699 = scalar_select %p698, %s31, 1
          %s700 = scalar_lea.vmem %s15, %s699
        $region88: #{tpu_custom_call.1} parent=39 // pred_fallthru
          _
      $region40: #{tpu_custom_call.1} parent=5 // pred_fallthru
        _
      %p701 = scmp.le.s32.totalorder 1, %s31
      %p702 = scmp.lt.s32.totalorder %s31, 3
      %p703 = pnand %p701, %p702
      %p704 = pneg %p703
      // Predicated region
      $region89: #{tpu_custom_call.1} parent=5 // pred_check
        _
      $region90: #{tpu_custom_call.1} parent=5 // pred_check_branch
        %706 = sbr.rel (%p703) target = $region92
      $region91: #{tpu_custom_call.1} parent=5 // pred_region
        %s707 = ssub.s32 %s31, 1
        // Predicated region
        $region93: #{tpu_custom_call.1} parent=91 // pred_check
          %p708 = pneg %p52
        $region94: #{tpu_custom_call.1} parent=91 // pred_check_branch
          %710 = sbr.rel (%p708) target = $region96
        $region95: #{tpu_custom_call.1} parent=91 // pred_region
          %712 = dma.done [#allocation4], 256
        $region96: #{tpu_custom_call.1} parent=91 // pred_fallthru
          _
        // Predicated region
        $region97: #{tpu_custom_call.1} parent=91 // pred_check
          %p713 = pneg %p73
        $region98: #{tpu_custom_call.1} parent=91 // pred_check_branch
          %715 = sbr.rel (%p713) target = $region100
        $region99: #{tpu_custom_call.1} parent=91 // pred_region
          %717 = dma.done [#allocation7], 256
        $region100: #{tpu_custom_call.1} parent=91 // pred_fallthru
          _
        // Predicated region
        $region101: #{tpu_custom_call.1} parent=91 // pred_check
          %p718 = pneg %p94
        $region102: #{tpu_custom_call.1} parent=91 // pred_check_branch
          %720 = sbr.rel (%p718) target = $region104
        $region103: #{tpu_custom_call.1} parent=91 // pred_region
          %722 = dma.done [#allocation7], 16
        $region104: #{tpu_custom_call.1} parent=91 // pred_fallthru
          _
        // Predicated region
        $region105: #{tpu_custom_call.1} parent=91 // pred_check
          %p723 = pneg %p115
        $region106: #{tpu_custom_call.1} parent=91 // pred_check_branch
          %725 = sbr.rel (%p723) target = $region108
        $region107: #{tpu_custom_call.1} parent=91 // pred_region
          %727 = dma.done [#allocation10], 16
        $region108: #{tpu_custom_call.1} parent=91 // pred_fallthru
          _
        %s728 = sand.u32 %s36, 1
        %s729 = scalar_lea.sflag [#allocation4], %s728
        %s730 = sand.u32 %s232, 1
        %s731 = scalar_lea.vmem [#allocation11], %s730
        // Predicated region
        $region109: #{tpu_custom_call.1} parent=91 // pred_check
          %p732 = pneg %p245
        $region110: #{tpu_custom_call.1} parent=91 // pred_check_branch
          %734 = sbr.rel (%p732) target = $region112
        $region111: #{tpu_custom_call.1} parent=91 // pred_region
          %736 = dma.done %s729, 16
        $region112: #{tpu_custom_call.1} parent=91 // pred_fallthru
          _
        %s737 = sand.u32 %s36, 1
        %s738 = scalar_lea.sflag [#allocation4], %s737
        %s739 = sand.u32 %s388, 1
        %s740 = scalar_lea.vmem [#allocation12], %s739
        // Predicated region
        $region113: #{tpu_custom_call.1} parent=91 // pred_check
          %p741 = pneg %p401
        $region114: #{tpu_custom_call.1} parent=91 // pred_check_branch
          %743 = sbr.rel (%p741) target = $region116
        $region115: #{tpu_custom_call.1} parent=91 // pred_region
          %745 = dma.done %s738, 16
        $region116: #{tpu_custom_call.1} parent=91 // pred_fallthru
          _
        // Predicated region
        $region117: #{tpu_custom_call.1} parent=91 // pred_check
          %p746 = pneg %p448
        $region118: #{tpu_custom_call.1} parent=91 // pred_check_branch
          %748 = sbr.rel (%p746) target = $region120
        $region119: #{tpu_custom_call.1} parent=91 // pred_region
          %750 = dma.done [#allocation7], 512
        $region120: #{tpu_custom_call.1} parent=91 // pred_fallthru
          _
        %p751 = pneg %p52
        %p752 = pneg %p49
        %p753 = pneg %p73
        %p754 = pneg %p70
        %p755 = pneg %p94
        %p756 = pneg %p91
        %p757 = pneg %p115
        %p758 = pneg %p112
        %p759 = scmp.lt.s32.totalorder %s36, 1
        %s760 = scalar_select %p759, %s36, 1
        %s761 = smul.addr %s760, 4
        %s762 = smul.addr %s761, 8
        %s763 = scalar_lea.vmem %s4, %s762
        %p764 = pneg %p141
        %p765 = pneg %p138
        %p766 = scmp.lt.s32.totalorder %s36, 1
        %s767 = scalar_select %p766, %s36, 1
        %s768 = scalar_lea.vmem %s5, %s767
        %p769 = pneg %p167
        %p770 = pneg %p164
        %p771 = scmp.lt.s32.totalorder %s36, 1
        %s772 = scalar_select %p771, %s36, 1
        %s773 = smul.addr %s772, 4
        %s774 = smul.addr %s773, 8
        %s775 = scalar_lea.vmem %s6, %s774
        %p776 = pneg %p193
        %p777 = pneg %p190
        %p778 = scmp.lt.s32.totalorder %s36, 1
        %s779 = scalar_select %p778, %s36, 1
        %s780 = scalar_lea.vmem %s7, %s779
        %p781 = pneg %p219
        %p782 = pneg %p216
        %s783 = sand.u32 %s36, 1
        %s784 = scalar_lea.sflag [#allocation4], %s783
        %s785 = sand.u32 %s232, 1
        %s786 = scalar_lea.vmem [#allocation11], %s785
        %p787 = pneg %p245
        %p788 = pneg %p242
        %p789 = scmp.lt.s32.totalorder %s36, 1
        %s790 = scalar_select %p789, %s36, 1
        %s791 = scalar_lea.vmem %s9, %s790
        %p792 = pneg %p271
        %p793 = pneg %p268
        %p794 = scmp.lt.s32.totalorder %s36, 1
        %s795 = scalar_select %p794, %s36, 1
        %s796 = smul.addr %s795, 4
        %s797 = smul.addr %s796, 8
        %s798 = scalar_lea.vmem %s10, %s797
        %p799 = pneg %p297
        %p800 = pneg %p294
        %p801 = scmp.lt.s32.totalorder %s36, 1
        %s802 = scalar_select %p801, %s36, 1
        %s803 = scalar_lea.vmem %s11, %s802
        %p804 = pneg %p323
        %p805 = pneg %p320
        %p806 = scmp.lt.s32.totalorder %s36, 1
        %s807 = scalar_select %p806, %s36, 1
        %s808 = smul.addr %s807, 8
        %s809 = smul.addr %s808, 8
        %s810 = scalar_lea.vmem %s12, %s809
        %p811 = pneg %p349
        %p812 = pneg %p346
        %p813 = scmp.lt.s32.totalorder %s36, 1
        %s814 = scalar_select %p813, %s36, 1
        %s815 = scalar_lea.vmem %s13, %s814
        %p816 = pneg %p375
        %p817 = pneg %p372
        %s818 = sand.u32 %s36, 1
        %s819 = scalar_lea.sflag [#allocation4], %s818
        %s820 = sand.u32 %s388, 1
        %s821 = scalar_lea.vmem [#allocation12], %s820
        %p822 = pneg %p401
        %p823 = pneg %p398
        %p824 = scmp.lt.s32.totalorder %s36, 1
        %s825 = scalar_select %p824, %s36, 1
        %s826 = scalar_lea.vmem %s15, %s825
        %p827 = pneg %p427
        %p828 = pneg %p424
        %p829 = pneg %p448
        %p830 = pneg %p445
        %p831 = pneg %p469
        %p832 = pneg %p466
        %p833 = pneg %p490
        %p834 = pneg %p487
        %p835 = pneg %p511
        %p836 = pneg %p508
        %p837 = scmp.lt.s32.totalorder %s36, 1
        %s838 = scalar_select %p837, %s36, 1
        %s839 = smul.addr %s838, 4
        %s840 = smul.addr %s839, 8
        %s841 = scalar_lea.vmem %s4, %s840
        %p842 = scmp.lt.s32.totalorder %s36, 1
        %s843 = scalar_select %p842, %s36, 1
        %s844 = scalar_lea.vmem %s5, %s843
        %p845 = scmp.lt.s32.totalorder %s36, 1
        %s846 = scalar_select %p845, %s36, 1
        %s847 = smul.addr %s846, 4
        %s848 = smul.addr %s847, 8
        %s849 = scalar_lea.vmem %s6, %s848
        %p850 = scmp.lt.s32.totalorder %s36, 1
        %s851 = scalar_select %p850, %s36, 1
        %s852 = scalar_lea.vmem %s7, %s851
        %p853 = scmp.lt.s32.totalorder %s36, 1
        %s854 = scalar_select %p853, %s36, 1
        %s855 = scalar_lea.vmem %s9, %s854
        %p856 = scmp.lt.s32.totalorder %s36, 1
        %s857 = scalar_select %p856, %s36, 1
        %s858 = smul.addr %s857, 4
        %s859 = smul.addr %s858, 8
        %s860 = scalar_lea.vmem %s10, %s859
        %p861 = scmp.lt.s32.totalorder %s36, 1
        %s862 = scalar_select %p861, %s36, 1
        %s863 = scalar_lea.vmem %s11, %s862
        %p864 = scmp.lt.s32.totalorder %s36, 1
        %s865 = scalar_select %p864, %s36, 1
        %s866 = smul.addr %s865, 8
        %s867 = smul.addr %s866, 8
        %s868 = scalar_lea.vmem %s12, %s867
        %p869 = scmp.lt.s32.totalorder %s36, 1
        %s870 = scalar_select %p869, %s36, 1
        %s871 = scalar_lea.vmem %s13, %s870
        %p872 = scmp.lt.s32.totalorder %s36, 1
        %s873 = scalar_select %p872, %s36, 1
        %s874 = scalar_lea.vmem %s15, %s873
        %p875 = scmp.eq.s32.totalorder %s36, 0
        // Predicated region
        $region121: #{tpu_custom_call.1} parent=91 // pred_check
          %p876 = pneg %p875
        $region122: #{tpu_custom_call.1} parent=91 // pred_check_branch
          %878 = sbr.rel (%p876) target = $region124
        $region123: #{tpu_custom_call.1} parent=91 // pred_region
          %v879 = vld [vmem:[#allocation3] sm:$0xff]
          %v880 = vld [vmem:[#allocation3 + $0x8] sm:$0xff]
          %v881 = vld [vmem:[#allocation8] sm:$0x1]
          %v882 = vld [vmem:[#allocation9] sm:$0x1]
          %vm883 = vcmask 261120
          %v884 = vsel %vm883, %v879, 0.0
          %885 = vadd.xlane.f32.xlu0 %v884
          %v886 = vpop.xlane.xlu0 %885
          %v887 = vsel %vm883, %v880, 0.0
          %888 = vadd.xlane.f32.xlu0 %v887
          %v889 = vpop.xlane.xlu0 %888
          %v890 = vrcp.pop 32.0
          %v891 = vmul.f32 32.0, %v890
          %v892 = vsub.f32 1.0, %v891
          %v893 = vmul.f32 %v890, %v892
          %v894 = vadd.f32 %v890, %v893
          %vm895 = vweird.f32 %v890
          %v896 = vsel %vm895, %v890, %v894
          %v897 = vmul.f32 %v886, %v896
          %v898 = vmul.f32 %v889, %v896
          %v899 = vsub.f32 %v879, %v897
          %v900 = vsub.f32 %v880, %v898
          %v901 = vmul.f32 %v899, %v899
          %v902 = vmul.f32 %v900, %v900
          %v903 = vsel %vm883, %v901, 0.0
          %904 = vadd.xlane.f32.xlu0 %v903
          %v905 = vpop.xlane.xlu0 %904
          %v906 = vsel %vm883, %v902, 0.0
          %907 = vadd.xlane.f32.xlu0 %v906
          %v908 = vpop.xlane.xlu0 %907
          %v909 = vmul.f32 %v905, %v896
          %v910 = vmul.f32 %v908, %v896
          %v911 = vadd.f32 %v909, 1e-12
          %v912 = vadd.f32 %v910, 1e-12
          %v913 = vrsqrt.pop %v911
          %v914 = vmul.f32 %v913, %v911
          %v915 = vmul.f32 %v914, %v913
          %v916 = vmul.f32 0.5, %v915
          %v917 = vsub.f32 1.5, %v916
          %v918 = vmul.f32 %v913, %v917
          %vm919 = vweird.f32 %v911
          %vm920 = vweird.f32 %v913
          %vm921 = vmor %vm919, %vm920
          %v922 = vsel %vm921, %v913, %v918
          %v923 = vrsqrt.pop %v912
          %v924 = vmul.f32 %v923, %v912
          %v925 = vmul.f32 %v924, %v923
          %v926 = vmul.f32 0.5, %v925
          %v927 = vsub.f32 1.5, %v926
          %v928 = vmul.f32 %v923, %v927
          %vm929 = vweird.f32 %v912
          %vm930 = vweird.f32 %v923
          %vm931 = vmor %vm929, %vm930
          %v932 = vsel %vm931, %v923, %v928
          %v933 = vmul.f32 %v899, %v922
          %v934 = vmul.f32 %v900, %v932
          %v936 = vperm.slane %v881, 0
          %v938 = vmul.f32 %v933, %v936
          %v939 = vmul.f32 %v934, %v936
          %v941 = vperm.slane %v882, 0
          %v943 = vadd.f32 %v938, %v941
          %v944 = vadd.f32 %v939, %v941
          %945 = vst.msk [vmem:[#allocation2] sm:$0xff] %vm883, %v943
          %946 = vst.msk [vmem:[#allocation2 + $0x8] sm:$0xff] %vm883, %v944
        $region124: #{tpu_custom_call.1} parent=91 // pred_fallthru
          _
        %v947 = vld [vmem:[#allocation2] sm:$0xff]
        %v948 = vld [vmem:[#allocation2 + $0x8] sm:$0xff]
        %v949 = vld [vmem:[#allocation6] sm:$0xff]
        %v950 = vld [vmem:[#allocation6 + $0x8] sm:$0xff]
        %v951 = vld [vmem:[%s841] sm:$0xff]
        %v952 = vld [vmem:[%s841 + $0x8] sm:$0xff]
        %v953 = vld [vmem:[%s841 + $0x10] sm:$0xff]
        %v954 = vld [vmem:[%s841 + $0x18] sm:$0xff]
        %v955 = vld [vmem:[%s844] sm:$0x1]
        %v956 = vld [vmem:[%s849] sm:$0xff]
        %v957 = vld [vmem:[%s849 + $0x8] sm:$0xff]
        %v958 = vld [vmem:[%s849 + $0x10] sm:$0xff]
        %v959 = vld [vmem:[%s849 + $0x18] sm:$0xff]
        %v960 = vld [vmem:[%s852] sm:$0x1]
        %v962 = vperm.slane %v955, 0
        %vm964 = vcmask 261120
        %v966 = vsel %vm964, %v947, 0
        %v969 = vsel %vm964, %v948, 0
        %971 = vmatpush.msra.mxu0 0.0
        %972 = vmatpush.msra.mxu0 0.0
        %973 = vmatpush.msra.mxu0 0.0
        %974 = vmatpush.msra.mxu0 0.0
        %975 = vmatpush.msra.mxu0 0.0
        %976 = vmatpush.msra.mxu0 0.0
        %977 = vmatpush.msra.mxu0 0.0
        %978 = vmatpush.msra.mxu0 0.0
        %979 = vmatpush.msra.mxu0 0.0
        %980 = vmatpush.msra.mxu0 0.0
        %981 = vmatpush.msra.mxu0 0.0
        %982 = vmatpush.msra.mxu0 0.0
        %983 = vmatpush.msra.mxu0 %v954
        %984 = vmatpush.msra.mxu0 %v953
        %985 = vmatpush.msra.mxu0 %v952
        %986 = vmatpush.msra.mxu0 %v951
        %987 = vmatmul.f32.gmra.mxu0 %v966
        %v988 = vpop.f32.mrf.mxu0
        %v989 = vadd.f32 %v962, %v988
        %990 = vmatmul.f32.gmra.mxu0 %v969
        %v991 = vpop.f32.mrf.mxu0
        %v992 = vadd.f32 %v962, %v991
        %993 = vdwg.mxu0
        %996 = vrot.lane.b32.xlu0 %v989, 96
        %v997 = vpop.permute.xlu0 %996
        %998 = vrot.lane.b32.xlu0 %v992, 96
        %v999 = vpop.permute.xlu0 %998
        %vm1000 = vcmask 64512
        %v1001 = vsel %vm1000, %v989, 0
        %v1003 = vsel %vm1000, %v992, 0
        %v1005 = vsel %vm1000, %v997, 0
        %v1007 = vsel %vm1000, %v999, 0
        %1009 = vmatpush.xpose.msra.mxu0 0.0
        %1010 = vmatpush.xpose.msra.mxu0 0.0
        %1011 = vmatpush.xpose.msra.mxu0 0.0
        %1012 = vmatpush.xpose.msra.mxu0 0.0
        %1013 = vmatpush.xpose.msra.mxu0 0.0
        %1014 = vmatpush.xpose.msra.mxu0 0.0
        %1015 = vmatpush.xpose.msra.mxu0 0.0
        %1016 = vmatpush.xpose.msra.mxu0 0.0
        %1017 = vmatpush.xpose.msra.mxu0 0.0
        %1018 = vmatpush.xpose.msra.mxu0 0.0
        %1019 = vmatpush.xpose.msra.mxu0 0.0
        %1020 = vmatpush.xpose.msra.mxu0 0.0
        %1021 = vmatpush.xpose.msra.mxu0 0.0
        %1022 = vmatpush.xpose.msra.mxu0 0.0
        %1023 = vmatpush.xpose.msra.mxu0 %v1007
        %1024 = vmatpush.xpose.msra.mxu0 %v1005
        %1025 = vmatmul.f32.gmra.mxu0 %v1001
        %v1026 = vpop.f32.mrf.mxu0
        %v1027 = vadd.f32 0.0, %v1026
        %1028 = vmatmul.f32.gmra.mxu0 %v1003
        %v1029 = vpop.f32.mrf.mxu0
        %v1030 = vadd.f32 0.0, %v1029
        %1031 = vdwg.mxu0
        %v1032 = vmul.f32 %v1027, 0.35355338
        %v1033 = vmul.f32 %v1030, 0.35355338
        %v1034 = vadd.f32 %v1032, %v949
        %v1035 = vadd.f32 %v1033, %v950
        %vm1036 = vcmask 130048
        %v1037 = vsel %vm1036, %v1034, -inf
        %1038 = vmax.xlane.f32.xlu0 %v1037
        %v1039 = vpop.xlane.xlu0 %1038
        %v1040 = vsel %vm1036, %v1035, -inf
        %1041 = vmax.xlane.f32.xlu0 %v1040
        %v1042 = vpop.xlane.xlu0 %1041
        %v1043 = vsub.f32 %v1034, %v1039
        %v1044 = vsub.f32 %v1035, %v1042
        %v1045 = vmul.f32 %v1043, 1.442695
        %v1046 = vpow.pop %v1045
        %v1047 = vmul.f32 %v1044, 1.442695
        %v1048 = vpow.pop %v1047
        %v1049 = vsel %vm1036, %v1046, 0.0
        %1050 = vadd.xlane.f32.xlu0 %v1049
        %v1051 = vpop.xlane.xlu0 %1050
        %v1052 = vsel %vm1036, %v1048, 0.0
        %1053 = vadd.xlane.f32.xlu0 %v1052
        %v1054 = vpop.xlane.xlu0 %1053
        %v1055 = vrcp.pop %v1051
        %v1056 = vrcp.pop %v1054
        %v1057 = vmul.f32 %v1046, %v1055
        %v1058 = vmul.f32 %v1048, %v1056
        %1059 = vrot.lane.b32.xlu0 %v989, 64
        %v1060 = vpop.permute.xlu0 %1059
        %1061 = vrot.lane.b32.xlu0 %v992, 64
        %v1062 = vpop.permute.xlu0 %1061
        %v1066 = vsel %vm1036, %v1057, 0
        %v1069 = vsel %vm1036, %v1058, 0
        %1071 = vmatpush.msra.mxu0 0.0
        %1072 = vmatpush.msra.mxu0 0.0
        %1073 = vmatpush.msra.mxu0 0.0
        %1074 = vmatpush.msra.mxu0 0.0
        %1075 = vmatpush.msra.mxu0 0.0
        %1076 = vmatpush.msra.mxu0 0.0
        %1077 = vmatpush.msra.mxu0 0.0
        %1078 = vmatpush.msra.mxu0 0.0
        %1079 = vmatpush.msra.mxu0 0.0
        %1080 = vmatpush.msra.mxu0 0.0
        %1081 = vmatpush.msra.mxu0 0.0
        %1082 = vmatpush.msra.mxu0 0.0
        %1083 = vmatpush.msra.mxu0 0.0
        %1084 = vmatpush.msra.mxu0 0.0
        %1085 = vmatpush.msra.mxu0 %v1062
        %1086 = vmatpush.msra.mxu0 %v1060
        %1087 = vmatmul.f32.gmra.mxu0 %v1066
        %v1088 = vpop.f32.mrf.mxu0
        %v1089 = vadd.f32 0.0, %v1088
        %1090 = vmatmul.f32.gmra.mxu0 %v1069
        %v1091 = vpop.f32.mrf.mxu0
        %v1092 = vadd.f32 0.0, %v1091
        %1093 = vdwg.mxu0
        %1094 = vrot.lane.b32.xlu0 %v989, 120
        %v1095 = vpop.permute.xlu0 %1094
        %1096 = vrot.lane.b32.xlu0 %v992, 120
        %v1097 = vpop.permute.xlu0 %1096
        %1098 = vrot.lane.b32.xlu0 %v989, 88
        %v1099 = vpop.permute.xlu0 %1098
        %1100 = vrot.lane.b32.xlu0 %v992, 88
        %v1101 = vpop.permute.xlu0 %1100
        %v1102 = vsel %vm1000, %v1095, 0
        %v1104 = vsel %vm1000, %v1097, 0
        %v1106 = vsel %vm1000, %v1099, 0
        %v1108 = vsel %vm1000, %v1101, 0
        %1110 = vmatpush.xpose.msra.mxu0 0.0
        %1111 = vmatpush.xpose.msra.mxu0 0.0
        %1112 = vmatpush.xpose.msra.mxu0 0.0
        %1113 = vmatpush.xpose.msra.mxu0 0.0
        %1114 = vmatpush.xpose.msra.mxu0 0.0
        %1115 = vmatpush.xpose.msra.mxu0 0.0
        %1116 = vmatpush.xpose.msra.mxu0 0.0
        %1117 = vmatpush.xpose.msra.mxu0 0.0
        %1118 = vmatpush.xpose.msra.mxu0 0.0
        %1119 = vmatpush.xpose.msra.mxu0 0.0
        %1120 = vmatpush.xpose.msra.mxu0 0.0
        %1121 = vmatpush.xpose.msra.mxu0 0.0
        %1122 = vmatpush.xpose.msra.mxu0 0.0
        %1123 = vmatpush.xpose.msra.mxu0 0.0
        %1124 = vmatpush.xpose.msra.mxu0 %v1108
        %1125 = vmatpush.xpose.msra.mxu0 %v1106
        %1126 = vmatmul.f32.gmra.mxu0 %v1102
        %v1127 = vpop.f32.mrf.mxu0
        %v1128 = vadd.f32 0.0, %v1127
        %1129 = vmatmul.f32.gmra.mxu0 %v1104
        %v1130 = vpop.f32.mrf.mxu0
        %v1131 = vadd.f32 0.0, %v1130
        %1132 = vdwg.mxu0
        %v1133 = vmul.f32 %v1128, 0.35355338
        %v1134 = vmul.f32 %v1131, 0.35355338
        %v1135 = vadd.f32 %v1133, %v949
        %v1136 = vadd.f32 %v1134, %v950
        %v1137 = vsel %vm1036, %v1135, -inf
        %1138 = vmax.xlane.f32.xlu0 %v1137
        %v1139 = vpop.xlane.xlu0 %1138
        %v1140 = vsel %vm1036, %v1136, -inf
        %1141 = vmax.xlane.f32.xlu0 %v1140
        %v1142 = vpop.xlane.xlu0 %1141
        %v1143 = vsub.f32 %v1135, %v1139
        %v1144 = vsub.f32 %v1136, %v1142
        %v1145 = vmul.f32 %v1143, 1.442695
        %v1146 = vpow.pop %v1145
        %v1147 = vmul.f32 %v1144, 1.442695
        %v1148 = vpow.pop %v1147
        %v1149 = vsel %vm1036, %v1146, 0.0
        %1150 = vadd.xlane.f32.xlu0 %v1149
        %v1151 = vpop.xlane.xlu0 %1150
        %v1152 = vsel %vm1036, %v1148, 0.0
        %1153 = vadd.xlane.f32.xlu0 %v1152
        %v1154 = vpop.xlane.xlu0 %1153
        %v1155 = vrcp.pop %v1151
        %v1156 = vrcp.pop %v1154
        %v1157 = vmul.f32 %v1146, %v1155
        %v1158 = vmul.f32 %v1148, %v1156
        %1159 = vrot.lane.b32.xlu0 %v989, 56
        %v1160 = vpop.permute.xlu0 %1159
        %1161 = vrot.lane.b32.xlu0 %v992, 56
        %v1162 = vpop.permute.xlu0 %1161
        %v1166 = vsel %vm1036, %v1157, 0
        %v1169 = vsel %vm1036, %v1158, 0
        %1171 = vmatpush.msra.mxu0 0.0
        %1172 = vmatpush.msra.mxu0 0.0
        %1173 = vmatpush.msra.mxu0 0.0
        %1174 = vmatpush.msra.mxu0 0.0
        %1175 = vmatpush.msra.mxu0 0.0
        %1176 = vmatpush.msra.mxu0 0.0
        %1177 = vmatpush.msra.mxu0 0.0
        %1178 = vmatpush.msra.mxu0 0.0
        %1179 = vmatpush.msra.mxu0 0.0
        %1180 = vmatpush.msra.mxu0 0.0
        %1181 = vmatpush.msra.mxu0 0.0
        %1182 = vmatpush.msra.mxu0 0.0
        %1183 = vmatpush.msra.mxu0 0.0
        %1184 = vmatpush.msra.mxu0 0.0
        %1185 = vmatpush.msra.mxu0 %v1162
        %1186 = vmatpush.msra.mxu0 %v1160
        %1187 = vmatmul.f32.gmra.mxu0 %v1166
        %v1188 = vpop.f32.mrf.mxu0
        %v1189 = vadd.f32 0.0, %v1188
        %1190 = vmatmul.f32.gmra.mxu0 %v1169
        %v1191 = vpop.f32.mrf.mxu0
        %v1192 = vadd.f32 0.0, %v1191
        %1193 = vdwg.mxu0
        %v1195 = vsel %vm1000, %v1189, 0
        %v1198 = vsel %vm1000, %v1192, 0
        %1200 = vmatpush.msra.mxu0 0.0
        %1201 = vmatpush.msra.mxu0 0.0
        %1202 = vmatpush.msra.mxu0 0.0
        %1203 = vmatpush.msra.mxu0 0.0
        %1204 = vmatpush.msra.mxu0 0.0
        %1205 = vmatpush.msra.mxu0 0.0
        %1206 = vmatpush.msra.mxu0 0.0
        %1207 = vmatpush.msra.mxu0 0.0
        %1208 = vmatpush.msra.mxu0 0.0
        %1209 = vmatpush.msra.mxu0 0.0
        %1210 = vmatpush.msra.mxu0 0.0
        %1211 = vmatpush.msra.mxu0 0.0
        %1212 = vmatpush.msra.mxu0 0.0
        %1213 = vmatpush.msra.mxu0 0.0
        %1214 = vmatpush.msra.mxu0 0.0
        %1215 = vmatpush.msra.mxu0 %v957
        %1216 = vmatmul.f32.gmra.mxu0 %v1195
        %v1217 = vpop.f32.mrf.mxu0
        %v1218 = vadd.f32 0.0, %v1217
        %1219 = vmatmul.f32.gmra.mxu0 %v1198
        %v1220 = vpop.f32.mrf.mxu0
        %v1221 = vadd.f32 0.0, %v1220
        %1222 = vdwg.mxu0
        %v1224 = vsel %vm1000, %v1089, 0
        %v1227 = vsel %vm1000, %v1092, 0
        %1229 = vmatpush.msra.mxu0 0.0
        %1230 = vmatpush.msra.mxu0 0.0
        %1231 = vmatpush.msra.mxu0 0.0
        %1232 = vmatpush.msra.mxu0 0.0
        %1233 = vmatpush.msra.mxu0 0.0
        %1234 = vmatpush.msra.mxu0 0.0
        %1235 = vmatpush.msra.mxu0 0.0
        %1236 = vmatpush.msra.mxu0 0.0
        %1237 = vmatpush.msra.mxu0 0.0
        %1238 = vmatpush.msra.mxu0 0.0
        %1239 = vmatpush.msra.mxu0 0.0
        %1240 = vmatpush.msra.mxu0 0.0
        %1241 = vmatpush.msra.mxu0 0.0
        %1242 = vmatpush.msra.mxu0 0.0
        %1243 = vmatpush.msra.mxu0 0.0
        %1244 = vmatpush.msra.mxu0 %v956
        %1245 = vmatmul.f32.gmra.mxu0 %v1224
        %v1246 = vpop.f32.mrf.mxu0
        %v1247 = vadd.f32 %v1218, %v1246
        %1248 = vmatmul.f32.gmra.mxu0 %v1227
        %v1249 = vpop.f32.mrf.mxu0
        %v1250 = vadd.f32 %v1221, %v1249
        %1251 = vdwg.mxu0
        %1252 = vrot.lane.b32.xlu0 %v989, 112
        %v1253 = vpop.permute.xlu0 %1252
        %1254 = vrot.lane.b32.xlu0 %v992, 112
        %v1255 = vpop.permute.xlu0 %1254
        %1256 = vrot.lane.b32.xlu0 %v989, 80
        %v1257 = vpop.permute.xlu0 %1256
        %1258 = vrot.lane.b32.xlu0 %v992, 80
        %v1259 = vpop.permute.xlu0 %1258
        %v1260 = vsel %vm1000, %v1253, 0
        %v1262 = vsel %vm1000, %v1255, 0
        %v1264 = vsel %vm1000, %v1257, 0
        %v1266 = vsel %vm1000, %v1259, 0
        %1268 = vmatpush.xpose.msra.mxu0 0.0
        %1269 = vmatpush.xpose.msra.mxu0 0.0
        %1270 = vmatpush.xpose.msra.mxu0 0.0
        %1271 = vmatpush.xpose.msra.mxu0 0.0
        %1272 = vmatpush.xpose.msra.mxu0 0.0
        %1273 = vmatpush.xpose.msra.mxu0 0.0
        %1274 = vmatpush.xpose.msra.mxu0 0.0
        %1275 = vmatpush.xpose.msra.mxu0 0.0
        %1276 = vmatpush.xpose.msra.mxu0 0.0
        %1277 = vmatpush.xpose.msra.mxu0 0.0
        %1278 = vmatpush.xpose.msra.mxu0 0.0
        %1279 = vmatpush.xpose.msra.mxu0 0.0
        %1280 = vmatpush.xpose.msra.mxu0 0.0
        %1281 = vmatpush.xpose.msra.mxu0 0.0
        %1282 = vmatpush.xpose.msra.mxu0 %v1266
        %1283 = vmatpush.xpose.msra.mxu0 %v1264
        %1284 = vmatmul.f32.gmra.mxu0 %v1260
        %v1285 = vpop.f32.mrf.mxu0
        %v1286 = vadd.f32 0.0, %v1285
        %1287 = vmatmul.f32.gmra.mxu0 %v1262
        %v1288 = vpop.f32.mrf.mxu0
        %v1289 = vadd.f32 0.0, %v1288
        %1290 = vdwg.mxu0
        %v1291 = vmul.f32 %v1286, 0.35355338
        %v1292 = vmul.f32 %v1289, 0.35355338
        %v1293 = vadd.f32 %v1291, %v949
        %v1294 = vadd.f32 %v1292, %v950
        %v1295 = vsel %vm1036, %v1293, -inf
        %1296 = vmax.xlane.f32.xlu0 %v1295
        %v1297 = vpop.xlane.xlu0 %1296
        %v1298 = vsel %vm1036, %v1294, -inf
        %1299 = vmax.xlane.f32.xlu0 %v1298
        %v1300 = vpop.xlane.xlu0 %1299
        %v1301 = vsub.f32 %v1293, %v1297
        %v1302 = vsub.f32 %v1294, %v1300
        %v1303 = vmul.f32 %v1301, 1.442695
        %v1304 = vpow.pop %v1303
        %v1305 = vmul.f32 %v1302, 1.442695
        %v1306 = vpow.pop %v1305
        %v1307 = vsel %vm1036, %v1304, 0.0
        %1308 = vadd.xlane.f32.xlu0 %v1307
        %v1309 = vpop.xlane.xlu0 %1308
        %v1310 = vsel %vm1036, %v1306, 0.0
        %1311 = vadd.xlane.f32.xlu0 %v1310
        %v1312 = vpop.xlane.xlu0 %1311
        %v1313 = vrcp.pop %v1309
        %v1314 = vrcp.pop %v1312
        %v1315 = vmul.f32 %v1304, %v1313
        %v1316 = vmul.f32 %v1306, %v1314
        %1317 = vrot.lane.b32.xlu0 %v989, 48
        %v1318 = vpop.permute.xlu0 %1317
        %1319 = vrot.lane.b32.xlu0 %v992, 48
        %v1320 = vpop.permute.xlu0 %1319
        %v1324 = vsel %vm1036, %v1315, 0
        %v1327 = vsel %vm1036, %v1316, 0
        %1329 = vmatpush.msra.mxu0 0.0
        %1330 = vmatpush.msra.mxu0 0.0
        %1331 = vmatpush.msra.mxu0 0.0
        %1332 = vmatpush.msra.mxu0 0.0
        %1333 = vmatpush.msra.mxu0 0.0
        %1334 = vmatpush.msra.mxu0 0.0
        %1335 = vmatpush.msra.mxu0 0.0
        %1336 = vmatpush.msra.mxu0 0.0
        %1337 = vmatpush.msra.mxu0 0.0
        %1338 = vmatpush.msra.mxu0 0.0
        %1339 = vmatpush.msra.mxu0 0.0
        %1340 = vmatpush.msra.mxu0 0.0
        %1341 = vmatpush.msra.mxu0 0.0
        %1342 = vmatpush.msra.mxu0 0.0
        %1343 = vmatpush.msra.mxu0 %v1320
        %1344 = vmatpush.msra.mxu0 %v1318
        %1345 = vmatmul.f32.gmra.mxu0 %v1324
        %v1346 = vpop.f32.mrf.mxu0
        %v1347 = vadd.f32 0.0, %v1346
        %1348 = vmatmul.f32.gmra.mxu0 %v1327
        %v1349 = vpop.f32.mrf.mxu0
        %v1350 = vadd.f32 0.0, %v1349
        %1351 = vdwg.mxu0
        %v1353 = vsel %vm1000, %v1347, 0
        %v1356 = vsel %vm1000, %v1350, 0
        %1358 = vmatpush.msra.mxu0 0.0
        %1359 = vmatpush.msra.mxu0 0.0
        %1360 = vmatpush.msra.mxu0 0.0
        %1361 = vmatpush.msra.mxu0 0.0
        %1362 = vmatpush.msra.mxu0 0.0
        %1363 = vmatpush.msra.mxu0 0.0
        %1364 = vmatpush.msra.mxu0 0.0
        %1365 = vmatpush.msra.mxu0 0.0
        %1366 = vmatpush.msra.mxu0 0.0
        %1367 = vmatpush.msra.mxu0 0.0
        %1368 = vmatpush.msra.mxu0 0.0
        %1369 = vmatpush.msra.mxu0 0.0
        %1370 = vmatpush.msra.mxu0 0.0
        %1371 = vmatpush.msra.mxu0 0.0
        %1372 = vmatpush.msra.mxu0 0.0
        %1373 = vmatpush.msra.mxu0 %v958
        %1374 = vmatmul.f32.gmra.mxu0 %v1353
        %v1375 = vpop.f32.mrf.mxu0
        %v1376 = vadd.f32 0.0, %v1375
        %1377 = vmatmul.f32.gmra.mxu0 %v1356
        %v1378 = vpop.f32.mrf.mxu0
        %v1379 = vadd.f32 0.0, %v1378
        %1380 = vdwg.mxu0
        %v1381 = vadd.f32 %v1247, %v1376
        %v1382 = vadd.f32 %v1250, %v1379
        %1383 = vrot.lane.b32.xlu0 %v989, 104
        %v1384 = vpop.permute.xlu0 %1383
        %1385 = vrot.lane.b32.xlu0 %v992, 104
        %v1386 = vpop.permute.xlu0 %1385
        %1387 = vrot.lane.b32.xlu0 %v989, 72
        %v1388 = vpop.permute.xlu0 %1387
        %1389 = vrot.lane.b32.xlu0 %v992, 72
        %v1390 = vpop.permute.xlu0 %1389
        %v1391 = vsel %vm1000, %v1384, 0
        %v1393 = vsel %vm1000, %v1386, 0
        %v1395 = vsel %vm1000, %v1388, 0
        %v1397 = vsel %vm1000, %v1390, 0
        %1399 = vmatpush.xpose.msra.mxu0 0.0
        %1400 = vmatpush.xpose.msra.mxu0 0.0
        %1401 = vmatpush.xpose.msra.mxu0 0.0
        %1402 = vmatpush.xpose.msra.mxu0 0.0
        %1403 = vmatpush.xpose.msra.mxu0 0.0
        %1404 = vmatpush.xpose.msra.mxu0 0.0
        %1405 = vmatpush.xpose.msra.mxu0 0.0
        %1406 = vmatpush.xpose.msra.mxu0 0.0
        %1407 = vmatpush.xpose.msra.mxu0 0.0
        %1408 = vmatpush.xpose.msra.mxu0 0.0
        %1409 = vmatpush.xpose.msra.mxu0 0.0
        %1410 = vmatpush.xpose.msra.mxu0 0.0
        %1411 = vmatpush.xpose.msra.mxu0 0.0
        %1412 = vmatpush.xpose.msra.mxu0 0.0
        %1413 = vmatpush.xpose.msra.mxu0 %v1397
        %1414 = vmatpush.xpose.msra.mxu0 %v1395
        %1415 = vmatmul.f32.gmra.mxu0 %v1391
        %v1416 = vpop.f32.mrf.mxu0
        %v1417 = vadd.f32 0.0, %v1416
        %1418 = vmatmul.f32.gmra.mxu0 %v1393
        %v1419 = vpop.f32.mrf.mxu0
        %v1420 = vadd.f32 0.0, %v1419
        %1421 = vdwg.mxu0
        %v1422 = vmul.f32 %v1417, 0.35355338
        %v1423 = vmul.f32 %v1420, 0.35355338
        %v1424 = vadd.f32 %v1422, %v949
        %v1425 = vadd.f32 %v1423, %v950
        %v1426 = vsel %vm1036, %v1424, -inf
        %1427 = vmax.xlane.f32.xlu0 %v1426
        %v1428 = vpop.xlane.xlu0 %1427
        %v1429 = vsel %vm1036, %v1425, -inf
        %1430 = vmax.xlane.f32.xlu0 %v1429
        %v1431 = vpop.xlane.xlu0 %1430
        %v1432 = vsub.f32 %v1424, %v1428
        %v1433 = vsub.f32 %v1425, %v1431
        %v1434 = vmul.f32 %v1432, 1.442695
        %v1435 = vpow.pop %v1434
        %v1436 = vmul.f32 %v1433, 1.442695
        %v1437 = vpow.pop %v1436
        %v1438 = vsel %vm1036, %v1435, 0.0
        %1439 = vadd.xlane.f32.xlu0 %v1438
        %v1440 = vpop.xlane.xlu0 %1439
        %v1441 = vsel %vm1036, %v1437, 0.0
        %1442 = vadd.xlane.f32.xlu0 %v1441
        %v1443 = vpop.xlane.xlu0 %1442
        %v1444 = vrcp.pop %v1440
        %v1445 = vrcp.pop %v1443
        %v1446 = vmul.f32 %v1435, %v1444
        %v1447 = vmul.f32 %v1437, %v1445
        %1448 = vrot.lane.b32.xlu0 %v989, 40
        %v1449 = vpop.permute.xlu0 %1448
        %1450 = vrot.lane.b32.xlu0 %v992, 40
        %v1451 = vpop.permute.xlu0 %1450
        %v1455 = vsel %vm1036, %v1446, 0
        %v1458 = vsel %vm1036, %v1447, 0
        %1460 = vmatpush.msra.mxu0 0.0
        %1461 = vmatpush.msra.mxu0 0.0
        %1462 = vmatpush.msra.mxu0 0.0
        %1463 = vmatpush.msra.mxu0 0.0
        %1464 = vmatpush.msra.mxu0 0.0
        %1465 = vmatpush.msra.mxu0 0.0
        %1466 = vmatpush.msra.mxu0 0.0
        %1467 = vmatpush.msra.mxu0 0.0
        %1468 = vmatpush.msra.mxu0 0.0
        %1469 = vmatpush.msra.mxu0 0.0
        %1470 = vmatpush.msra.mxu0 0.0
        %1471 = vmatpush.msra.mxu0 0.0
        %1472 = vmatpush.msra.mxu0 0.0
        %1473 = vmatpush.msra.mxu0 0.0
        %1474 = vmatpush.msra.mxu0 %v1451
        %1475 = vmatpush.msra.mxu0 %v1449
        %1476 = vmatmul.f32.gmra.mxu0 %v1455
        %v1477 = vpop.f32.mrf.mxu0
        %v1478 = vadd.f32 0.0, %v1477
        %1479 = vmatmul.f32.gmra.mxu0 %v1458
        %v1480 = vpop.f32.mrf.mxu0
        %v1481 = vadd.f32 0.0, %v1480
        %1482 = vdwg.mxu0
        %v1484 = vsel %vm1000, %v1478, 0
        %v1487 = vsel %vm1000, %v1481, 0
        %1489 = vmatpush.msra.mxu0 0.0
        %1490 = vmatpush.msra.mxu0 0.0
        %1491 = vmatpush.msra.mxu0 0.0
        %1492 = vmatpush.msra.mxu0 0.0
        %1493 = vmatpush.msra.mxu0 0.0
        %1494 = vmatpush.msra.mxu0 0.0
        %1495 = vmatpush.msra.mxu0 0.0
        %1496 = vmatpush.msra.mxu0 0.0
        %1497 = vmatpush.msra.mxu0 0.0
        %1498 = vmatpush.msra.mxu0 0.0
        %1499 = vmatpush.msra.mxu0 0.0
        %1500 = vmatpush.msra.mxu0 0.0
        %1501 = vmatpush.msra.mxu0 0.0
        %1502 = vmatpush.msra.mxu0 0.0
        %1503 = vmatpush.msra.mxu0 0.0
        %1504 = vmatpush.msra.mxu0 %v959
        %1505 = vmatmul.f32.gmra.mxu0 %v1484
        %v1506 = vpop.f32.mrf.mxu0
        %v1507 = vadd.f32 0.0, %v1506
        %1508 = vmatmul.f32.gmra.mxu0 %v1487
        %v1509 = vpop.f32.mrf.mxu0
        %v1510 = vadd.f32 0.0, %v1509
        %1511 = vdwg.mxu0
        %v1512 = vadd.f32 %v1381, %v1507
        %v1513 = vadd.f32 %v1382, %v1510
        %v1515 = vperm.slane %v960, 0
        %v1517 = vadd.f32 %v1512, %v1515
        %v1518 = vadd.f32 %v1513, %v1515
        %v1519 = vadd.f32 %v947, %v1517
        %v1520 = vadd.f32 %v948, %v1518
        %v1521 = vld [vmem:[%s731] sm:$0x1]
        %v1522 = vld [vmem:[%s855] sm:$0x1]
        %v1523 = vsel %vm964, %v1519, 0.0
        %1524 = vadd.xlane.f32.xlu0 %v1523
        %v1525 = vpop.xlane.xlu0 %1524
        %v1526 = vsel %vm964, %v1520, 0.0
        %1527 = vadd.xlane.f32.xlu0 %v1526
        %v1528 = vpop.xlane.xlu0 %1527
        %v1529 = vrcp.pop 32.0
        %v1530 = vmul.f32 32.0, %v1529
        %v1531 = vsub.f32 1.0, %v1530
        %v1532 = vmul.f32 %v1529, %v1531
        %v1533 = vadd.f32 %v1529, %v1532
        %vm1534 = vweird.f32 %v1529
        %v1535 = vsel %vm1534, %v1529, %v1533
        %v1536 = vmul.f32 %v1525, %v1535
        %v1537 = vmul.f32 %v1528, %v1535
        %v1538 = vsub.f32 %v1519, %v1536
        %v1539 = vsub.f32 %v1520, %v1537
        %v1540 = vmul.f32 %v1538, %v1538
        %v1541 = vmul.f32 %v1539, %v1539
        %v1542 = vsel %vm964, %v1540, 0.0
        %1543 = vadd.xlane.f32.xlu0 %v1542
        %v1544 = vpop.xlane.xlu0 %1543
        %v1545 = vsel %vm964, %v1541, 0.0
        %1546 = vadd.xlane.f32.xlu0 %v1545
        %v1547 = vpop.xlane.xlu0 %1546
        %v1548 = vmul.f32 %v1544, %v1535
        %v1549 = vmul.f32 %v1547, %v1535
        %v1550 = vadd.f32 %v1548, 1e-12
        %v1551 = vadd.f32 %v1549, 1e-12
        %v1552 = vrsqrt.pop %v1550
        %v1553 = vmul.f32 %v1552, %v1550
        %v1554 = vmul.f32 %v1553, %v1552
        %v1555 = vmul.f32 0.5, %v1554
        %v1556 = vsub.f32 1.5, %v1555
        %v1557 = vmul.f32 %v1552, %v1556
        %vm1558 = vweird.f32 %v1550
        %vm1559 = vweird.f32 %v1552
        %vm1560 = vmor %vm1558, %vm1559
        %v1561 = vsel %vm1560, %v1552, %v1557
        %v1562 = vrsqrt.pop %v1551
        %v1563 = vmul.f32 %v1562, %v1551
        %v1564 = vmul.f32 %v1563, %v1562
        %v1565 = vmul.f32 0.5, %v1564
        %v1566 = vsub.f32 1.5, %v1565
        %v1567 = vmul.f32 %v1562, %v1566
        %vm1568 = vweird.f32 %v1551
        %vm1569 = vweird.f32 %v1562
        %vm1570 = vmor %vm1568, %vm1569
        %v1571 = vsel %vm1570, %v1562, %v1567
        %v1572 = vmul.f32 %v1538, %v1561
        %v1573 = vmul.f32 %v1539, %v1571
        %v1575 = vperm.slane %v1521, 0
        %v1577 = vmul.f32 %v1572, %v1575
        %v1578 = vmul.f32 %v1573, %v1575
        %v1580 = vperm.slane %v1522, 0
        %v1582 = vadd.f32 %v1577, %v1580
        %v1583 = vadd.f32 %v1578, %v1580
        %v1584 = vld [vmem:[%s860] sm:$0xff]
        %v1585 = vld [vmem:[%s860 + $0x8] sm:$0xff]
        %v1586 = vld [vmem:[%s860 + $0x10] sm:$0xff]
        %v1587 = vld [vmem:[%s860 + $0x18] sm:$0xff]
        %v1588 = vld [vmem:[%s863] sm:$0x1]
        %v1590 = vperm.slane %v1588, 0
        %v1593 = vsel %vm964, %v1582, 0
        %v1596 = vsel %vm964, %v1583, 0
        %1598 = vmatpush.msra.mxu0 0.0
        %1599 = vmatpush.msra.mxu0 0.0
        %1600 = vmatpush.msra.mxu0 0.0
        %1601 = vmatpush.msra.mxu0 0.0
        %1602 = vmatpush.msra.mxu0 0.0
        %1603 = vmatpush.msra.mxu0 0.0
        %1604 = vmatpush.msra.mxu0 0.0
        %1605 = vmatpush.msra.mxu0 0.0
        %1606 = vmatpush.msra.mxu0 0.0
        %1607 = vmatpush.msra.mxu0 0.0
        %1608 = vmatpush.msra.mxu0 0.0
        %1609 = vmatpush.msra.mxu0 0.0
        %1610 = vmatpush.msra.mxu0 %v1587
        %1611 = vmatpush.msra.mxu0 %v1586
        %1612 = vmatpush.msra.mxu0 %v1585
        %1613 = vmatpush.msra.mxu0 %v1584
        %1614 = vmatmul.f32.gmra.mxu0 %v1593
        %v1615 = vpop.f32.mrf.mxu0
        %v1616 = vadd.f32 %v1590, %v1615
        %1617 = vmatmul.f32.gmra.mxu0 %v1596
        %v1618 = vpop.f32.mrf.mxu0
        %v1619 = vadd.f32 %v1590, %v1618
        %1620 = vdwg.mxu0
        %v1621 = vmul.f32 %v1616, %v1616
        %v1622 = vmul.f32 %v1619, %v1619
        %v1623 = vmul.f32 %v1616, %v1621
        %v1624 = vmul.f32 %v1619, %v1622
        %v1625 = vmul.f32 %v1623, 0.044715
        %v1626 = vmul.f32 %v1624, 0.044715
        %v1627 = vadd.f32 %v1616, %v1625
        %v1628 = vadd.f32 %v1619, %v1626
        %v1629 = vmul.f32 %v1627, 0.7978846
        %v1630 = vmul.f32 %v1628, 0.7978846
        %v1631 = vtanh.pop %v1629
        %v1632 = vtanh.pop %v1630
        %v1633 = vadd.f32 %v1631, 1.0
        %v1634 = vadd.f32 %v1632, 1.0
        %v1635 = vmul.f32 %v1633, 0.5
        %v1636 = vmul.f32 %v1634, 0.5
        %v1637 = vmul.f32 %v1616, %v1635
        %v1638 = vmul.f32 %v1619, %v1636
        %v1639 = vld [vmem:[%s868] sm:$0xff]
        %v1640 = vld [vmem:[%s868 + $0x8] sm:$0xff]
        %v1641 = vld [vmem:[%s868 + $0x10] sm:$0xff]
        %v1642 = vld [vmem:[%s868 + $0x18] sm:$0xff]
        %v1643 = vld [vmem:[%s868 + $0x20] sm:$0xff]
        %v1644 = vld [vmem:[%s868 + $0x28] sm:$0xff]
        %v1645 = vld [vmem:[%s868 + $0x30] sm:$0xff]
        %v1646 = vld [vmem:[%s868 + $0x38] sm:$0xff]
        %v1647 = vld [vmem:[%s871] sm:$0x1]
        %v1649 = vperm.slane %v1647, 0
        %vm1651 = vcmask 523264
        %v1653 = vsel %vm1651, %v1637, 0
        %v1656 = vsel %vm1651, %v1638, 0
        %1658 = vmatpush.msra.mxu0 0.0
        %1659 = vmatpush.msra.mxu0 0.0
        %1660 = vmatpush.msra.mxu0 0.0
        %1661 = vmatpush.msra.mxu0 0.0
        %1662 = vmatpush.msra.mxu0 0.0
        %1663 = vmatpush.msra.mxu0 0.0
        %1664 = vmatpush.msra.mxu0 0.0
        %1665 = vmatpush.msra.mxu0 0.0
        %1666 = vmatpush.msra.mxu0 %v1646
        %1667 = vmatpush.msra.mxu0 %v1645
        %1668 = vmatpush.msra.mxu0 %v1644
        %1669 = vmatpush.msra.mxu0 %v1643
        %1670 = vmatpush.msra.mxu0 %v1642
        %1671 = vmatpush.msra.mxu0 %v1641
        %1672 = vmatpush.msra.mxu0 %v1640
        %1673 = vmatpush.msra.mxu0 %v1639
        %1674 = vmatmul.f32.gmra.mxu0 %v1653
        %v1675 = vpop.f32.mrf.mxu0
        %v1676 = vadd.f32 %v1649, %v1675
        %1677 = vmatmul.f32.gmra.mxu0 %v1656
        %v1678 = vpop.f32.mrf.mxu0
        %v1679 = vadd.f32 %v1649, %v1678
        %1680 = vdwg.mxu0
        %v1681 = vadd.f32 %v1582, %v1676
        %v1682 = vadd.f32 %v1583, %v1679
        %v1683 = vld [vmem:[%s740] sm:$0x1]
        %v1684 = vld [vmem:[%s874] sm:$0x1]
        %v1685 = vsel %vm964, %v1681, 0.0
        %1686 = vadd.xlane.f32.xlu0 %v1685
        %v1687 = vpop.xlane.xlu0 %1686
        %v1688 = vsel %vm964, %v1682, 0.0
        %1689 = vadd.xlane.f32.xlu0 %v1688
        %v1690 = vpop.xlane.xlu0 %1689
        %v1691 = vmul.f32 %v1687, %v1535
        %v1692 = vmul.f32 %v1690, %v1535
        %v1693 = vsub.f32 %v1681, %v1691
        %v1694 = vsub.f32 %v1682, %v1692
        %v1695 = vmul.f32 %v1693, %v1693
        %v1696 = vmul.f32 %v1694, %v1694
        %v1697 = vsel %vm964, %v1695, 0.0
        %1698 = vadd.xlane.f32.xlu0 %v1697
        %v1699 = vpop.xlane.xlu0 %1698
        %v1700 = vsel %vm964, %v1696, 0.0
        %1701 = vadd.xlane.f32.xlu0 %v1700
        %v1702 = vpop.xlane.xlu0 %1701
        %v1703 = vmul.f32 %v1699, %v1535
        %v1704 = vmul.f32 %v1702, %v1535
        %v1705 = vadd.f32 %v1703, 1e-12
        %v1706 = vadd.f32 %v1704, 1e-12
        %v1707 = vrsqrt.pop %v1705
        %v1708 = vmul.f32 %v1707, %v1705
        %v1709 = vmul.f32 %v1708, %v1707
        %v1710 = vmul.f32 0.5, %v1709
        %v1711 = vsub.f32 1.5, %v1710
        %v1712 = vmul.f32 %v1707, %v1711
        %vm1713 = vweird.f32 %v1705
        %vm1714 = vweird.f32 %v1707
        %vm1715 = vmor %vm1713, %vm1714
        %v1716 = vsel %vm1715, %v1707, %v1712
        %v1717 = vrsqrt.pop %v1706
        %v1718 = vmul.f32 %v1717, %v1706
        %v1719 = vmul.f32 %v1718, %v1717
        %v1720 = vmul.f32 0.5, %v1719
        %v1721 = vsub.f32 1.5, %v1720
        %v1722 = vmul.f32 %v1717, %v1721
        %vm1723 = vweird.f32 %v1706
        %vm1724 = vweird.f32 %v1717
        %vm1725 = vmor %vm1723, %vm1724
        %v1726 = vsel %vm1725, %v1717, %v1722
        %v1727 = vmul.f32 %v1693, %v1716
        %v1728 = vmul.f32 %v1694, %v1726
        %v1730 = vperm.slane %v1683, 0
        %v1732 = vmul.f32 %v1727, %v1730
        %v1733 = vmul.f32 %v1728, %v1730
        %v1735 = vperm.slane %v1684, 0
        %v1737 = vadd.f32 %v1732, %v1735
        %v1738 = vadd.f32 %v1733, %v1735
        %1739 = vst.msk [vmem:[#allocation2] sm:$0xff] %vm964, %v1737
        %1740 = vst.msk [vmem:[#allocation2 + $0x8] sm:$0xff] %vm964, %v1738
        %p1741 = scmp.eq.s32.totalorder %s36, 1
        // Predicated region
        $region125: #{tpu_custom_call.1} parent=91 // pred_check
          %p1742 = pneg %p1741
        $region126: #{tpu_custom_call.1} parent=91 // pred_check_branch
          %1744 = sbr.rel (%p1742) target = $region128
        $region127: #{tpu_custom_call.1} parent=91 // pred_region
          %1745 = vst.msk [vmem:[#allocation14] sm:$0xff] %vm964, %v1737
          %1746 = vst.msk [vmem:[#allocation14 + $0x8] sm:$0xff] %vm964, %v1738
          %v1748 = vrot.slane %v1738, 7
          %vm1750 = vcmask 1040384
          %v1751 = vsel %vm1750, %v1737, %v1748
          %v1752 = vld [vmem:[#allocation13] sm:$0xff]
          %v1753 = vld [vmem:[#allocation13 + $0x8] sm:$0xff]
          %v1754 = vld [vmem:[#allocation13 + $0x10] sm:$0xff]
          %v1755 = vld [vmem:[#allocation13 + $0x18] sm:$0xff]
          %v1756 = vld [vmem:[%s17] sm:$0x1]
          %v1758 = vperm.slane %v1756, 0
          %v1761 = vsel %vm964, %v1751, 0
          %1763 = vmatpush.msra.mxu0 0.0
          %1764 = vmatpush.msra.mxu0 0.0
          %1765 = vmatpush.msra.mxu0 0.0
          %1766 = vmatpush.msra.mxu0 0.0
          %1767 = vmatpush.msra.mxu0 0.0
          %1768 = vmatpush.msra.mxu0 0.0
          %1769 = vmatpush.msra.mxu0 0.0
          %1770 = vmatpush.msra.mxu0 0.0
          %1771 = vmatpush.msra.mxu0 0.0
          %1772 = vmatpush.msra.mxu0 0.0
          %1773 = vmatpush.msra.mxu0 0.0
          %1774 = vmatpush.msra.mxu0 0.0
          %1775 = vmatpush.msra.mxu0 %v1755
          %1776 = vmatpush.msra.mxu0 %v1754
          %1777 = vmatpush.msra.mxu0 %v1753
          %1778 = vmatpush.msra.mxu0 %v1752
          %1779 = vmatmul.f32.gmra.mxu0 %v1761
          %v1780 = vpop.f32.mrf.mxu0
          %v1781 = vadd.f32 %v1758, %v1780
          %1782 = vdwg.mxu0
          %v1783 = vtanh.pop %v1781
          %vm1784 = vcmask 254976
          %1785 = vst.msk [vmem:[#allocation15] sm:$0x3] %vm1784, %v1783
        $region128: #{tpu_custom_call.1} parent=91 // pred_fallthru
          _
        // Predicated region
        $region129: #{tpu_custom_call.1} parent=91 // pred_check
          %p1786 = pneg %p487
        $region130: #{tpu_custom_call.1} parent=91 // pred_check_branch
          %1788 = sbr.rel (%p1786) target = $region132
        $region131: #{tpu_custom_call.1} parent=91 // pred_region
          %1790 = vsyncadd [#allocation5], 0
          %s1791 = sshll.u32 [#allocation14], 4
          %s1792 = int_to_ptr.vmem [resolvable:$true] %s1791
          %s1793 = sshll.u32 %s18, 4
          %s1794 = int_to_ptr.hbm [resolvable:$true] %s1793
          %1799 = dma.vmem_to_hbm [thread:$0]  %s1792, 256, %s1794, [#allocation5], 128, 128, 8
        $region132: #{tpu_custom_call.1} parent=91 // pred_fallthru
          _
        // Predicated region
        $region133: #{tpu_custom_call.1} parent=91 // pred_check
          %p1800 = pneg %p508
        $region134: #{tpu_custom_call.1} parent=91 // pred_check_branch
          %1802 = sbr.rel (%p1800) target = $region136
        $region135: #{tpu_custom_call.1} parent=91 // pred_region
          %1804 = vsyncadd [#allocation16], 0
          %s1806 = sshll.u32 [#allocation15], 4
          %s1807 = int_to_ptr.vmem [resolvable:$true] %s1806
          %s1808 = sshll.u32 %s19, 4
          %s1809 = int_to_ptr.hbm [resolvable:$true] %s1808
          %1811 = dma.vmem_to_hbm [thread:$0]  %s1807, 32, %s1809, [#allocation16]
        $region136: #{tpu_custom_call.1} parent=91 // pred_fallthru
          _
        // Predicated region
        $region137: #{tpu_custom_call.1} parent=91 // pred_check
          %p1812 = pneg %p487
        $region138: #{tpu_custom_call.1} parent=91 // pred_check_branch
          %1814 = sbr.rel (%p1812) target = $region140
        $region139: #{tpu_custom_call.1} parent=91 // pred_region
          %1816 = dma.done [#allocation5], 256
        $region140: #{tpu_custom_call.1} parent=91 // pred_fallthru
          _
        // Predicated region
        $region141: #{tpu_custom_call.1} parent=91 // pred_check
          %p1817 = pneg %p508
        $region142: #{tpu_custom_call.1} parent=91 // pred_check_branch
          %1819 = sbr.rel (%p1817) target = $region144
        $region143: #{tpu_custom_call.1} parent=91 // pred_region
          %1821 = dma.done [#allocation16], 32
        $region144: #{tpu_custom_call.1} parent=91 // pred_fallthru
          _
      $region92: #{tpu_custom_call.1} parent=5 // pred_fallthru
        _
      %p1822 = scmp.le.s32.totalorder 2, %s31
      // Predicated region
      $region145: #{tpu_custom_call.1} parent=5 // pred_check
        %p1823 = pneg %p1822
      $region146: #{tpu_custom_call.1} parent=5 // pred_check_branch
        %1825 = sbr.rel (%p1823) target = $region148
      $region147: #{tpu_custom_call.1} parent=5 // pred_region
        %s1826 = ssub.s32 %s31, 2
      $region148: #{tpu_custom_call.1} parent=5 // pred_fallthru
        _
    $region6: #{tpu_custom_call.1} parent=1 // loop_footer
      %s35 = sadd.s32 1, %s31
    $region7: #{tpu_custom_call.1} parent=1 // loop_footer_branch
      %30 = sbr.rel target = $region3
    $region8: #{tpu_custom_call.1} parent=1 // loop_exit
      _
    %1827 = vsyncpa [#allocation4], 1
    %s1828 = scalar_lea.sflag [#allocation4], 1
    %1829 = vsyncpa %s1828, 1
    %1830 = vsyncpa [#allocation7], 1
    %1831 = vsyncpa [#allocation10], 1
    %1832 = vsyncpa [#allocation5], 1
    %s1833 = scalar_lea.sflag [#allocation5], 1
    %1834 = vsyncpa %s1833, 1
    %1835 = vsyncpa [#allocation16], 1

</llo_original>
